<compile_context>
chip_gen: v5e
topology: v5e:2x2
jax: 0.10.0
libtpu: 0.0.40
codegen_flags: <defaults>
</compile_context>

<pallas_src>
import numpy as np
import jax
import jax.numpy as jnp
from jax import lax
from jax.experimental import pallas as pl
from jax.experimental.pallas import tpu as pltpu

STRIDE, KSIZE, PAD, OUT_PAD = 4, 5, 1, 1
BN_EPS = 1e-3

# For output row phase ph = oh % 4: oh = 4q + ph gets weight row kh applied to input row q + dh.
_TAPS = {0: [(1, 0)], 1: [(2, 0)], 2: [(3, 0)], 3: [(4, 0), (0, 1)]}

# Plan VMEM usage well under v7x's 64 MiB physical VMEM (v5e/v6e have 128 MiB).
_VMEM_BUDGET = 40 * 1024 * 1024
_VMEM_LIMIT = 48 * 1024 * 1024
_TM_CAP = 2048        # mem-bound efficiency plateaus past ~1024 rows/tile


def _round_up(a, b):
    return -(-a // b) * b


def _plan_tiles(M, Kdim, Ncol):
    """Pick (tm, M_pad, cache_y) from a per-generation-safe VMEM budget."""
    itemsize = 4
    resident = 2 * Kdim * Ncol * itemsize       # phase-packed weights (double-buffered)
    resident += 2 * 2 * Ncol * itemsize         # packed gamma/beta
    resident += 2 * 8 * Ncol * itemsize         # stats / scale-shift scratches (8-sublane pad)
    per_row = 2 * (Kdim + Ncol) * itemsize      # patches + output double buffers, per tile row
    avail = max(_VMEM_BUDGET - resident, per_row * 8)
    tm = min((avail // per_row) // 8 * 8, _TM_CAP)
    tm = max(tm, 8)
    tm = min(tm, _round_up(M, 8))
    M_pad = _round_up(M, tm)
    # Cache the conv output in a persistent VMEM scratch when it fits: pass 1 then skips the
    # patches re-read and the duplicate MXU pass.
    y_bytes = M_pad * Ncol * itemsize
    cache_y = (resident + tm * per_row + y_bytes) <= _VMEM_BUDGET
    return tm, M_pad, cache_y


def _make_fused_kernel(eps, tm, cout, inv_count, cache_y):
    def kernel(p_ref, w_ref, gb_ref, o_ref, stats_sc, ss_sc, *y_sc_maybe):
        pss = pl.program_id(0)    # 0 = stats pass, 1 = normalize/write pass
        m = pl.program_id(1)

        @pl.when((pss == 0) & (m == 0))
        def _init():
            stats_sc[...] = jnp.zeros_like(stats_sc)

        if cache_y:
            y_sc = y_sc_maybe[0]

            @pl.when(pss == 0)
            def _stats_pass():
                acc = jnp.dot(p_ref[...], w_ref[...],
                              preferred_element_type=jnp.float32)
                row = pl.multiple_of(m * tm, tm)
                y_sc[pl.ds(row, tm), :] = acc
                stats_sc[0:1, :] += jnp.sum(acc, axis=0, keepdims=True)
                stats_sc[1:2, :] += jnp.sum(acc * acc, axis=0, keepdims=True)

            def load_acc():
                row = pl.multiple_of(m * tm, tm)
                return y_sc[pl.ds(row, tm), :]
        else:
            acc_all = jnp.dot(p_ref[...], w_ref[...],
                              preferred_element_type=jnp.float32)

            @pl.when(pss == 0)
            def _stats_pass():
                stats_sc[0:1, :] += jnp.sum(acc_all, axis=0, keepdims=True)
                stats_sc[1:2, :] += jnp.sum(acc_all * acc_all, axis=0, keepdims=True)

            def load_acc():
                return acc_all

        @pl.when((pss == 1) & (m == 0))
        def _finalize_stats():
            # Fold the 16 phase columns of each channel via a log2 lane roll-reduce; the sum
            # ends up broadcast to all 16*Cout columns (only rows 0/1 of the scratch are used).
            s = stats_sc[...]
            for k in range(4):
                s = s + pltpu.roll(s, shift=cout * (1 << k), axis=1)
            mean = s[0:1, :] * inv_count
            esq = s[1:2, :] * inv_count
            var = jnp.maximum(esq - mean * mean, 0.0)   # clamp E[x^2]-E[x]^2 cancellation
            scale = gb_ref[0:1, :] * lax.rsqrt(var + eps)
            ss_sc[0:1, :] = scale
            ss_sc[1:2, :] = gb_ref[1:2, :] - mean * scale

        @pl.when(pss == 1)
        def _write():
            acc = load_acc()
            o_ref[...] = jnp.maximum(acc * ss_sc[0:1, :] + ss_sc[1:2, :], 0.0)

    return kernel


def upsampler_block11(x, weight, bias, gamma, beta, *, compute_dtype=jnp.float32):
    """x: (N, Cin, H, W) f32; weight: (Cin, Cout, 5, 5) as in nn.ConvTranspose2d.

    `bias` is accepted for API parity but intentionally NOT applied in the kernel: with
    training batch-stat BatchNorm a per-channel constant offset cancels exactly.
    `compute_dtype=jnp.bfloat16` halves the streamed matmul bytes (BN re-normalizes, so the
    accuracy impact is tiny); default f32 keeps bit-level matching with the reference.
    """
    x = x.astype(jnp.float32)
    N, Cin, H, W = x.shape
    wCin, Cout, K, K2 = weight.shape
    assert (wCin, K, K2) == (Cin, KSIZE, KSIZE)
    del bias   # cancelled exactly by the batch-stat BatchNorm

    M = N * H * W          # one 4x4 output phase-block per input pixel
    Kdim = 4 * Cin         # 2x2 input taps per phase-block
    Ncol = 16 * Cout       # 16 phases x Cout channels (lane-dense for Cout >= 8)

    # --- stride-phase patches: 2x2 taps of the bottom/right zero-padded input, channels-last.
    # TODO(synk): build these taps in-kernel from the padded NHWC input (halo DMA) to avoid
    # materializing a 4x-input-sized array in HBM; biggest win on v5e/v6e HBM bandwidth.
    xt = jnp.transpose(x, (0, 2, 3, 1))                         # (N, H, W, Cin)
    xp = jnp.pad(xt, ((0, 0), (0, 1), (0, 1), (0, 0)))
    taps = [xp[:, dh:dh + H, dw:dw + W, :] for dh in (0, 1) for dw in (0, 1)]
    patches = jnp.concatenate(taps, axis=-1).reshape(M, Kdim)

    # --- phase-packed weights: wp[(dh,dw,ci), (ph,pw,co)] = weight[ci, co, kh(ph,dh), kw(pw,dw)]
    S = np.zeros((4, 2, KSIZE), np.float32)
    for ph, tps in _TAPS.items():
        for kh, dh in tps:
            S[ph, dh, kh] = 1.0
    S = jnp.asarray(S)
    wp = jnp.einsum("phk,qwl,iokl->hwipqo", S, S, weight.astype(jnp.float32),
                    precision=lax.Precision.HIGHEST).reshape(Kdim, Ncol)

    patches = patches.astype(compute_dtype)
    wp = wp.astype(compute_dtype)

    # --- packed per-column BN affine params: row 0 = gamma, row 1 = beta (phase-tiled)
    gb = jnp.stack([jnp.tile(gamma.astype(jnp.float32), 16),
                    jnp.tile(beta.astype(jnp.float32), 16)], axis=0)

    tm, M_pad, cache_y = _plan_tiles(M, Kdim, Ncol)
    nm = M_pad // tm
    if M_pad > M:   # zero rows contribute nothing to the stats (conv bias removed)
        patches = jnp.pad(patches, ((0, M_pad - M), (0, 0)))

    # When y is cached, pin the patches window to block 0 during pass 1 (no re-streaming).
    patches_map = (lambda p, m: (m * (1 - p), 0)) if cache_y else (lambda p, m: (m, 0))

    scratch = [pltpu.VMEM((8, Ncol), jnp.float32),   # rows 0/1 = sum / sumsq (8-row pad anyway)
               pltpu.VMEM((2, Ncol), jnp.float32)]   # rows 0/1 = scale / shift
    if cache_y:
        scratch.append(pltpu.VMEM((M_pad, Ncol), jnp.float32))   # persistent conv output

    y = pl.pallas_call(
        _make_fused_kernel(BN_EPS, tm, Cout, 1.0 / float(16 * M), cache_y),
        out_shape=jax.ShapeDtypeStruct((M_pad, Ncol), jnp.float32),
        grid_spec=pltpu.PrefetchScalarGridSpec(
            num_scalar_prefetch=0,
            grid=(2, nm),                                         # (pass, M-tile); M-tile minor
            in_specs=[
                pl.BlockSpec((tm, Kdim), patches_map),            # patches
                pl.BlockSpec((Kdim, Ncol), lambda p, m: (0, 0)),  # phase-packed weights
                pl.BlockSpec((2, Ncol), lambda p, m: (0, 0)),     # gamma/beta
            ],
            # pass 0 pins the output window to block 0 and never stores; grid order guarantees
            # pass 1's write to block 0 is the last thing flushed to that HBM region.
            out_specs=pl.BlockSpec((tm, Ncol), lambda p, m: (m * p, 0)),
            scratch_shapes=scratch),
        compiler_params=pltpu.CompilerParams(
            dimension_semantics=("arbitrary", "arbitrary"),
            vmem_limit_bytes=_VMEM_LIMIT),
        # TODO(synk): on v7x both TensorCores could be used by emitting per-core partial sums in
        # pass 0 (CMEM/VMEM_SHARED + core_barrier) or by splitting pass 1 onto a parallel axis.
    )(patches, wp, gb)

    # (n, q, r, ph, pw, co) -> NCHW.
    # TODO(synk): fold this phase-unpack into pass 1 (in-kernel XLU shuffles) when the consumer
    # accepts NHWC; PyTorch semantics here require NCHW, so keep the lane-dense kernel layout
    # plus one XLA transpose.
    out = y[:M].reshape(N, H, W, 4, 4, Cout).transpose(0, 5, 1, 3, 2, 4)
    return out.reshape(N, Cout, 4 * H, 4 * W)


# ---------------- pure-JAX reference (sanity check; includes the conv bias) ----------------

def _reference(x, weight, bias, gamma, beta):
    wf = jnp.flip(weight, axis=(2, 3)).transpose(1, 0, 2, 3)    # OIHW
    plo, phi = KSIZE - 1 - PAD, KSIZE - 1 - PAD + OUT_PAD
    y = jax.lax.conv_general_dilated(
        x, wf, window_strides=(1, 1), padding=[(plo, phi), (plo, phi)],
        lhs_dilation=(STRIDE, STRIDE),
        dimension_numbers=("NCHW", "OIHW", "NCHW"),
        precision=jax.lax.Precision.HIGHEST)
    y = y + bias[None, :, None, None]
    mean = y.mean(axis=(0, 2, 3), keepdims=True)
    var = ((y - mean) ** 2).mean(axis=(0, 2, 3), keepdims=True)
    yn = (y - mean) / jnp.sqrt(var + BN_EPS)
    return jnp.maximum(yn * gamma[None, :, None, None] + beta[None, :, None, None], 0.0)


if __name__ == "__main__":
    key = jax.random.PRNGKey(0)
    kx, kw, kb, kg, kbt = jax.random.split(key, 5)

    N, Cin, Cout, H = 2, 4, 8, 16                     # output = (2, 8, 64, 64)
    x = jax.random.normal(kx, (N, Cin, H, H), jnp.float32)
    fan = Cin * KSIZE * KSIZE
    weight = jax.random.normal(kw, (Cin, Cout, KSIZE, KSIZE), jnp.float32) / jnp.sqrt(fan)
    bias = 0.1 * jax.random.normal(kb, (Cout,), jnp.float32)
    gamma = 1.0 + 0.1 * jax.random.normal(kg, (Cout,), jnp.float32)
    beta = 0.1 * jax.random.normal(kbt, (Cout,), jnp.float32)

    fn = jax.jit(upsampler_block11)
    out = jax.block_until_ready(fn(x, weight, bias, gamma, beta))
    assert out.shape == (N, Cout, 4 * H, 4 * H), out.shape

    ref = _reference(x, weight, bias, gamma, beta)
    if not bool(jnp.allclose(out, ref, atol=1e-2, rtol=1e-2)):
        raise AssertionError("Pallas result mismatches reference")

    print("KERNEL_OK")
</pallas_src>

<mosaic_0001>
module attributes {stable_mosaic.version = 11 : i64} {
  func.func @kernel(%arg0: i32, %arg1: i32, %arg2: memref<512x16xf32, #tpu.memory_space<vmem>>, %arg3: memref<16x128xf32, #tpu.memory_space<vmem>>, %arg4: memref<2x128xf32, #tpu.memory_space<vmem>>, %arg5: memref<512x128xf32, #tpu.memory_space<vmem>>, %arg6: memref<8x128xf32, #tpu.memory_space<vmem>>, %arg7: memref<2x128xf32, #tpu.memory_space<vmem>>, %arg8: memref<512x128xf32, #tpu.memory_space<vmem>>) attributes {dimension_semantics = [#tpu.dimension_semantics<arbitrary>, #tpu.dimension_semantics<arbitrary>], iteration_bounds = array<i64: 2, 1>, scalar_prefetch = 0 : i64, scratch_operands = 3 : i64, tpu.core_type = #tpu.core_type<tc>, window_params = [{transform_indices = @transform_0, window_bounds = array<i64: 512, 16>}, {pipeline_mode = #tpu.pipeline_mode<synchronous>, transform_indices = @transform_1, window_bounds = array<i64: 16, 128>}, {pipeline_mode = #tpu.pipeline_mode<synchronous>, transform_indices = @transform_2, window_bounds = array<i64: 2, 128>}, {transform_indices = @transform_3, window_bounds = array<i64: 512, 128>}]} {
    %c0_i32 = arith.constant 0 : i32
    %0 = arith.cmpi eq, %arg0, %c0_i32 : i32
    %c0_i32_0 = arith.constant 0 : i32
    %1 = arith.cmpi eq, %arg1, %c0_i32_0 : i32
    %2 = arith.andi %0, %1 : i1
    %3 = arith.extui %2 : i1 to i32
    %c0_i32_1 = arith.constant 0 : i32
    %4 = arith.cmpi ne, %3, %c0_i32_1 : i32
    scf.if %4 {
      %cst = arith.constant 0.000000e+00 : f32
      %16 = vector.broadcast %cst : f32 to vector<8x128xf32>
      %c0 = arith.constant 0 : index
      %c0_8 = arith.constant 0 : index
      %17 = vector.load %arg6[%c0, %c0_8] : memref<8x128xf32, #tpu.memory_space<vmem>>, vector<8x128xf32>
      tpu.vector_store %arg6[%c0, %c0_8], %16 {strides = array<i32>} : memref<8x128xf32, #tpu.memory_space<vmem>>, vector<8x128xf32>,
    } else {
    }
    %c0_i32_2 = arith.constant 0 : i32
    %5 = arith.cmpi eq, %arg0, %c0_i32_2 : i32
    %6 = arith.extui %5 : i1 to i32
    %c0_i32_3 = arith.constant 0 : i32
    %7 = arith.cmpi ne, %6, %c0_i32_3 : i32
    scf.if %7 {
      %c0 = arith.constant 0 : index
      %c0_8 = arith.constant 0 : index
      %16 = vector.load %arg2[%c0, %c0_8] : memref<512x16xf32, #tpu.memory_space<vmem>>, vector<512x16xf32>
      %c0_9 = arith.constant 0 : index
      %c0_10 = arith.constant 0 : index
      %17 = vector.load %arg3[%c0_9, %c0_10] : memref<16x128xf32, #tpu.memory_space<vmem>>, vector<16x128xf32>
      %cst = arith.constant dense<0.000000e+00> : vector<512x128xf32>
      %18 = tpu.matmul %16, %17, %cst {dimension_numbers = #tpu.dot_dimension_numbers<[1], [0], [0], [1], [0, 0, 1, 1], [], []>} : vector<512x16xf32>, vector<16x128xf32>, vector<512x128xf32> -> vector<512x128xf32>
      %c512_i32 = arith.constant 512 : i32
      %19 = arith.muli %arg1, %c512_i32 : i32
      %20 = tpu.assume_multiple %19, 512 : i32
      %21 = arith.index_cast %20 : i32 to index
      %c0_11 = arith.constant 0 : index
      %22 = vector.load %arg8[%21, %c0_11] : memref<512x128xf32, #tpu.memory_space<vmem>>, vector<512x128xf32>
      tpu.vector_store %arg8[%21, %c0_11], %18 {strides = array<i32>} : memref<512x128xf32, #tpu.memory_space<vmem>>, vector<512x128xf32>,
      %c0_12 = arith.constant 0 : index
      %c0_13 = arith.constant 0 : index
      %23 = vector.load %arg6[%c0_12, %c0_13] : memref<8x128xf32, #tpu.memory_space<vmem>>, vector<1x128xf32>
      %cst_14 = arith.constant dense<0.000000e+00> : vector<128xf32>
      %24 = vector.multi_reduction <add>, %18, %cst_14 [0] : vector<512x128xf32> to vector<128xf32>
      %25 = vector.shape_cast %24 : vector<128xf32> to vector<1x128xf32>
      %26 = arith.addf %23, %25 : vector<1x128xf32>
      %c0_15 = arith.constant 0 : index
      %c0_16 = arith.constant 0 : index
      %27 = vector.load %arg6[%c0_15, %c0_16] : memref<8x128xf32, #tpu.memory_space<vmem>>, vector<1x128xf32>
      tpu.vector_store %arg6[%c0_15, %c0_16], %26 {strides = array<i32>} : memref<8x128xf32, #tpu.memory_space<vmem>>, vector<1x128xf32>,
      %c1 = arith.constant 1 : index
      %c0_17 = arith.constant 0 : index
      %28 = vector.load %arg6[%c1, %c0_17] : memref<8x128xf32, #tpu.memory_space<vmem>>, vector<1x128xf32>
      %29 = arith.mulf %18, %18 : vector<512x128xf32>
      %cst_18 = arith.constant dense<0.000000e+00> : vector<128xf32>
      %30 = vector.multi_reduction <add>, %29, %cst_18 [0] : vector<512x128xf32> to vector<128xf32>
      %31 = vector.shape_cast %30 : vector<128xf32> to vector<1x128xf32>
      %32 = arith.addf %28, %31 : vector<1x128xf32>
      %c1_19 = arith.constant 1 : index
      %c0_20 = arith.constant 0 : index
      %33 = vector.load %arg6[%c1_19, %c0_20] : memref<8x128xf32, #tpu.memory_space<vmem>>, vector<1x128xf32>
      tpu.vector_store %arg6[%c1_19, %c0_20], %32 {strides = array<i32>} : memref<8x128xf32, #tpu.memory_space<vmem>>, vector<1x128xf32>,
    } else {
    }
    %c1_i32 = arith.constant 1 : i32
    %8 = arith.cmpi eq, %arg0, %c1_i32 : i32
    %c0_i32_4 = arith.constant 0 : i32
    %9 = arith.cmpi eq, %arg1, %c0_i32_4 : i32
    %10 = arith.andi %8, %9 : i1
    %11 = arith.extui %10 : i1 to i32
    %c0_i32_5 = arith.constant 0 : i32
    %12 = arith.cmpi ne, %11, %c0_i32_5 : i32
    scf.if %12 {
      %c0 = arith.constant 0 : index
      %c0_8 = arith.constant 0 : index
      %16 = vector.load %arg6[%c0, %c0_8] : memref<8x128xf32, #tpu.memory_space<vmem>>, vector<8x128xf32>
      %c8_i32 = arith.constant 8 : i32
      %17 = tpu.dynamic_rotate %16 by %c8_i32 dim 1 : vector<8x128xf32>, i32 -> vector<8x128xf32>
      %18 = arith.addf %16, %17 : vector<8x128xf32>
      %c16_i32 = arith.constant 16 : i32
      %19 = tpu.dynamic_rotate %18 by %c16_i32 dim 1 : vector<8x128xf32>, i32 -> vector<8x128xf32>
      %20 = arith.addf %18, %19 : vector<8x128xf32>
      %c32_i32 = arith.constant 32 : i32
      %21 = tpu.dynamic_rotate %20 by %c32_i32 dim 1 : vector<8x128xf32>, i32 -> vector<8x128xf32>
      %22 = arith.addf %20, %21 : vector<8x128xf32>
      %c64_i32 = arith.constant 64 : i32
      %23 = tpu.dynamic_rotate %22 by %c64_i32 dim 1 : vector<8x128xf32>, i32 -> vector<8x128xf32>
      %24 = arith.addf %22, %23 : vector<8x128xf32>
      %25 = vector.extract_strided_slice %24 {offsets = [0, 0], sizes = [1, 128], strides = [1, 1]} : vector<8x128xf32> to vector<1x128xf32>
      %cst = arith.constant 1.22070313E-4 : f32
      %26 = vector.broadcast %cst : f32 to vector<1x128xf32>
      %27 = arith.mulf %25, %26 : vector<1x128xf32>
      %28 = vector.extract_strided_slice %24 {offsets = [1, 0], sizes = [1, 128], strides = [1, 1]} : vector<8x128xf32> to vector<1x128xf32>
      %cst_9 = arith.constant 1.22070313E-4 : f32
      %29 = vector.broadcast %cst_9 : f32 to vector<1x128xf32>
      %30 = arith.mulf %28, %29 : vector<1x128xf32>
      %31 = arith.mulf %27, %27 : vector<1x128xf32>
      %32 = arith.subf %30, %31 : vector<1x128xf32>
      %cst_10 = arith.constant 0.000000e+00 : f32
      %33 = vector.broadcast %cst_10 : f32 to vector<1x128xf32>
      %34 = arith.maximumf %32, %33 : vector<1x128xf32>
      %c0_11 = arith.constant 0 : index
      %c0_12 = arith.constant 0 : index
      %35 = vector.load %arg4[%c0_11, %c0_12] : memref<2x128xf32, #tpu.memory_space<vmem>>, vector<1x128xf32>
      %cst_13 = arith.constant 1.000000e-03 : f32
      %36 = vector.broadcast %cst_13 : f32 to vector<1x128xf32>
      %37 = arith.addf %34, %36 : vector<1x128xf32>
      %38 = math.rsqrt %37 : vector<1x128xf32>
      %39 = arith.mulf %35, %38 : vector<1x128xf32>
      %c0_14 = arith.constant 0 : index
      %c0_15 = arith.constant 0 : index
      %40 = vector.load %arg7[%c0_14, %c0_15] : memref<2x128xf32, #tpu.memory_space<vmem>>, vector<1x128xf32>
      tpu.vector_store %arg7[%c0_14, %c0_15], %39 {strides = array<i32>} : memref<2x128xf32, #tpu.memory_space<vmem>>, vector<1x128xf32>,
      %c1 = arith.constant 1 : index
      %c0_16 = arith.constant 0 : index
      %41 = vector.load %arg4[%c1, %c0_16] : memref<2x128xf32, #tpu.memory_space<vmem>>, vector<1x128xf32>
      %42 = arith.mulf %27, %39 : vector<1x128xf32>
      %43 = arith.subf %41, %42 : vector<1x128xf32>
      %c1_17 = arith.constant 1 : index
      %c0_18 = arith.constant 0 : index
      %44 = vector.load %arg7[%c1_17, %c0_18] : memref<2x128xf32, #tpu.memory_space<vmem>>, vector<1x128xf32>
      tpu.vector_store %arg7[%c1_17, %c0_18], %43 {strides = array<i32>} : memref<2x128xf32, #tpu.memory_space<vmem>>, vector<1x128xf32>,
    } else {
    }
    %c1_i32_6 = arith.constant 1 : i32
    %13 = arith.cmpi eq, %arg0, %c1_i32_6 : i32
    %14 = arith.extui %13 : i1 to i32
    %c0_i32_7 = arith.constant 0 : i32
    %15 = arith.cmpi ne, %14, %c0_i32_7 : i32
    scf.if %15 {
      %c512_i32 = arith.constant 512 : i32
      %16 = arith.muli %arg1, %c512_i32 : i32
      %17 = tpu.assume_multiple %16, 512 : i32
      %18 = arith.index_cast %17 : i32 to index
      %c0 = arith.constant 0 : index
      %19 = vector.load %arg8[%18, %c0] : memref<512x128xf32, #tpu.memory_space<vmem>>, vector<512x128xf32>
      %c0_8 = arith.constant 0 : index
      %c0_9 = arith.constant 0 : index
      %20 = vector.load %arg7[%c0_8, %c0_9] : memref<2x128xf32, #tpu.memory_space<vmem>>, vector<1x128xf32>
      %21 = vector.broadcast %20 : vector<1x128xf32> to vector<512x128xf32>
      %22 = arith.mulf %19, %21 : vector<512x128xf32>
      %c1 = arith.constant 1 : index
      %c0_10 = arith.constant 0 : index
      %23 = vector.load %arg7[%c1, %c0_10] : memref<2x128xf32, #tpu.memory_space<vmem>>, vector<1x128xf32>
      %24 = vector.broadcast %23 : vector<1x128xf32> to vector<512x128xf32>
      %25 = arith.addf %22, %24 : vector<512x128xf32>
      %cst = arith.constant 0.000000e+00 : f32
      %26 = vector.broadcast %cst : f32 to vector<512x128xf32>
      %27 = arith.maximumf %25, %26 : vector<512x128xf32>
      %c0_11 = arith.constant 0 : index
      %c0_12 = arith.constant 0 : index
      %28 = vector.load %arg5[%c0_11, %c0_12] : memref<512x128xf32, #tpu.memory_space<vmem>>, vector<512x128xf32>
      tpu.vector_store %arg5[%c0_11, %c0_12], %27 {strides = array<i32>} : memref<512x128xf32, #tpu.memory_space<vmem>>, vector<512x128xf32>,
    } else {
    }
    return
  }
  func.func @transform_0(%arg0: i32, %arg1: i32) -> (i32, i32) {
    %c1_i32 = arith.constant 1 : i32
    %0 = arith.subi %c1_i32, %arg0 : i32
    %1 = arith.muli %arg1, %0 : i32
    %c0_i32 = arith.constant 0 : i32
    %c0_i32_0 = arith.constant 0 : i32
    return %1, %c0_i32 : i32, i32
  }
  func.func @transform_1(%arg0: i32, %arg1: i32) -> (i32, i32) {
    %c0_i32 = arith.constant 0 : i32
    %c0_i32_0 = arith.constant 0 : i32
    %c0_i32_1 = arith.constant 0 : i32
    return %c0_i32, %c0_i32_0 : i32, i32
  }
  func.func @transform_2(%arg0: i32, %arg1: i32) -> (i32, i32) {
    %c0_i32 = arith.constant 0 : i32
    %c0_i32_0 = arith.constant 0 : i32
    %c0_i32_1 = arith.constant 0 : i32
    return %c0_i32, %c0_i32_0 : i32, i32
  }
  func.func @transform_3(%arg0: i32, %arg1: i32) -> (i32, i32) {
    %0 = arith.muli %arg1, %arg0 : i32
    %c0_i32 = arith.constant 0 : i32
    %c0_i32_0 = arith.constant 0 : i32
    return %0, %c0_i32 : i32, i32
  }
}

</mosaic_0001>

<llo_original>
// kernel: tile.18
$region0: #{tile.18}
  %s0 = inlined_call_operand.vmem [shape: f32[16,8], index: 0, kind: input, shape index: {}]
  %s1 = inlined_call_operand.vmem [shape: f32[1,128], index: 1, kind: output, shape index: {}]
  $region1: #{tile.18} parent=0
    #allocation0 [shape = 'u8[4096]{0}', space=vmem, size = 0x1000, scoped, tag = 'scoped mem for output reshape']
    %v2 = vld [vmem:[%s0] sm:$0x1]
    %vm3 = vcmask 64512
    %4 = vst.msk [vmem:[#allocation0] sm:$0x1] %vm3, %v2
    %s5 = scalar_lea.vmem %s0, 15
    %v6 = vld [vmem:[%s5] sm:$0x1]
    %7 = vrot.lane.b32.xlu0 %v6, 120
    %v8 = vpop.permute.xlu0 %7
    %vm9 = vcmask 1048512
    %10 = vst.msk [vmem:[#allocation0] sm:$0x1] %vm9, %v8
    %s11 = scalar_lea.vmem %s0, 14
    %v12 = vld [vmem:[%s11] sm:$0x1]
    %13 = vrot.lane.b32.xlu0 %v12, 112
    %v14 = vpop.permute.xlu0 %13
    %vm15 = vcmask 982912
    %16 = vst.msk [vmem:[#allocation0] sm:$0x1] %vm15, %v14
    %s17 = scalar_lea.vmem %s0, 13
    %v18 = vld [vmem:[%s17] sm:$0x1]
    %19 = vrot.lane.b32.xlu0 %v18, 104
    %v20 = vpop.permute.xlu0 %19
    %vm21 = vcmask 917312
    %22 = vst.msk [vmem:[#allocation0] sm:$0x1] %vm21, %v20
    %s23 = scalar_lea.vmem %s0, 12
    %v24 = vld [vmem:[%s23] sm:$0x1]
    %25 = vrot.lane.b32.xlu0 %v24, 96
    %v26 = vpop.permute.xlu0 %25
    %vm27 = vcmask 851712
    %28 = vst.msk [vmem:[#allocation0] sm:$0x1] %vm27, %v26
    %s29 = scalar_lea.vmem %s0, 11
    %v30 = vld [vmem:[%s29] sm:$0x1]
    %31 = vrot.lane.b32.xlu0 %v30, 88
    %v32 = vpop.permute.xlu0 %31
    %vm33 = vcmask 786112
    %34 = vst.msk [vmem:[#allocation0] sm:$0x1] %vm33, %v32
    %s35 = scalar_lea.vmem %s0, 10
    %v36 = vld [vmem:[%s35] sm:$0x1]
    %37 = vrot.lane.b32.xlu0 %v36, 80
    %v38 = vpop.permute.xlu0 %37
    %vm39 = vcmask 720512
    %40 = vst.msk [vmem:[#allocation0] sm:$0x1] %vm39, %v38
    %s41 = scalar_lea.vmem %s0, 9
    %v42 = vld [vmem:[%s41] sm:$0x1]
    %43 = vrot.lane.b32.xlu0 %v42, 72
    %v44 = vpop.permute.xlu0 %43
    %vm45 = vcmask 654912
    %46 = vst.msk [vmem:[#allocation0] sm:$0x1] %vm45, %v44
    %s47 = scalar_lea.vmem %s0, 8
    %v48 = vld [vmem:[%s47] sm:$0x1]
    %49 = vrot.lane.b32.xlu0 %v48, 64
    %v50 = vpop.permute.xlu0 %49
    %vm51 = vcmask 589312
    %52 = vst.msk [vmem:[#allocation0] sm:$0x1] %vm51, %v50
    %s53 = scalar_lea.vmem %s0, 7
    %v54 = vld [vmem:[%s53] sm:$0x1]
    %55 = vrot.lane.b32.xlu0 %v54, 56
    %v56 = vpop.permute.xlu0 %55
    %vm57 = vcmask 523712
    %58 = vst.msk [vmem:[#allocation0] sm:$0x1] %vm57, %v56
    %s59 = scalar_lea.vmem %s0, 6
    %v60 = vld [vmem:[%s59] sm:$0x1]
    %61 = vrot.lane.b32.xlu0 %v60, 48
    %v62 = vpop.permute.xlu0 %61
    %vm63 = vcmask 458112
    %64 = vst.msk [vmem:[#allocation0] sm:$0x1] %vm63, %v62
    %s65 = scalar_lea.vmem %s0, 5
    %v66 = vld [vmem:[%s65] sm:$0x1]
    %67 = vrot.lane.b32.xlu0 %v66, 40
    %v68 = vpop.permute.xlu0 %67
    %vm69 = vcmask 392512
    %70 = vst.msk [vmem:[#allocation0] sm:$0x1] %vm69, %v68
    %s71 = scalar_lea.vmem %s0, 4
    %v72 = vld [vmem:[%s71] sm:$0x1]
    %73 = vrot.lane.b32.xlu0 %v72, 32
    %v74 = vpop.permute.xlu0 %73
    %vm75 = vcmask 326912
    %76 = vst.msk [vmem:[#allocation0] sm:$0x1] %vm75, %v74
    %s77 = scalar_lea.vmem %s0, 3
    %v78 = vld [vmem:[%s77] sm:$0x1]
    %79 = vrot.lane.b32.xlu0 %v78, 24
    %v80 = vpop.permute.xlu0 %79
    %vm81 = vcmask 261312
    %82 = vst.msk [vmem:[#allocation0] sm:$0x1] %vm81, %v80
    %s83 = scalar_lea.vmem %s0, 2
    %v84 = vld [vmem:[%s83] sm:$0x1]
    %85 = vrot.lane.b32.xlu0 %v84, 16
    %v86 = vpop.permute.xlu0 %85
    %vm87 = vcmask 195712
    %88 = vst.msk [vmem:[#allocation0] sm:$0x1] %vm87, %v86
    %s89 = scalar_lea.vmem %s0, 1
    %v90 = vld [vmem:[%s89] sm:$0x1]
    %91 = vrot.lane.b32.xlu0 %v90, 8
    %v92 = vpop.permute.xlu0 %91
    %vm93 = vcmask 130112
    %94 = vst.msk [vmem:[#allocation0] sm:$0x1] %vm93, %v92
    %s96 = ssub.s32 2, 1
    %v97 = vld [vmem:[#allocation0] sm:%s96]
    %s99 = ssub.s32 2, 1
    %100 = vst [vmem:[%s1] sm:%s99] %v97

// kernel: tile.13
$region0: #{tile.13}
  #allocation2 [shape = 's32[1]{0}', space=sflag, size = 0x4, scoped, tag = 'scoped memory for tile.13']
  %s0 = inlined_call_operand.hbm [shape: f32[8], index: 0, kind: input, shape index: {}]
  %s1 = inlined_call_operand.vmem [shape: f32[16,8], index: 1, kind: output, shape index: {}]
  $region1: #{tile.13} parent=0
    #allocation0 [shape = 'u8[512]{0}', space=vmem, size = 0x400, scoped, tag = 'operand span for operand 0']
    #allocation1 [shape = 's32[1]{0}', space=sflag, size = 0x4, scoped, tag = 'scoped memory for tile.13']
    %2 = vsyncpa [#allocation1], 0
    // Predicated region
    $region2: #{tile.13} parent=1 // pred_check
      _
    $region3: #{tile.13} parent=1 // pred_check_branch
      %4 = sbr.rel (0) target = $region5
    $region4: #{tile.13} parent=1 // pred_region
      %6 = vsyncadd [#allocation1], 0
      %s8 = sshll.u32 %s0, 4
      %s9 = int_to_ptr.hbm [resolvable:$true] %s8
      %s10 = sshll.u32 [#allocation0], 4
      %s11 = int_to_ptr.vmem [resolvable:$true] %s10
      %13 = dma.hbm_to_vmem [thread:$0]  %s9, 16, %s11, [#allocation1]
    $region5: #{tile.13} parent=1 // pred_fallthru
      _
    // Predicated region
    $region6: #{tile.13} parent=1 // pred_check
      _
    $region7: #{tile.13} parent=1 // pred_check_branch
      %15 = sbr.rel (0) target = $region9
    $region8: #{tile.13} parent=1 // pred_region
      %17 = dma.done [#allocation1], 16
    $region9: #{tile.13} parent=1 // pred_fallthru
      _
    %v18 = vld [vmem:[#allocation0] ss:$0 sm:$0xff]
    %19 = vst [vmem:[%s1] sm:$0xff] %v18
    %s20 = scalar_lea.vmem %s1, 8
    %21 = vst [vmem:[%s20] sm:$0xff] %v18
    %22 = vsyncpa [#allocation1], 1

// kernel: upsampler_block11.1
$region0: #{upsampler_block11.1}
  #allocation0 [shape = 'u32[]', space=smem, size = 0x4, offset = 0x4, fixed_abs, tag = 'smem constant byte address 0x4 - core index']
  #allocation1 [shape = 'u32[72,128]{1,0:T(1,128)}', space=vmem, size = 0x9000, scoped, tag = 'internal scratch']
  #allocation2 [shape = 'f32[8,128]{1,0:T(8,128)}', space=vmem, size = 0x1000, scoped, tag = 'scratch operand']
  #allocation3 [shape = 'f32[2,128]{1,0:T(2,128)}', space=vmem, size = 0x400, scoped, tag = 'scratch operand']
  #allocation4 [shape = 'f32[512,128]{1,0:T(8,128)}', space=vmem, size = 0x40000, scoped, tag = 'scratch operand']
  %s0 = inlined_call_operand.vmem [shape: f32[512,16], index: 0, kind: input, shape index: {}]
  %s1 = inlined_call_operand.vmem [shape: f32[16,128], index: 1, kind: input, shape index: {}]
  %s2 = inlined_call_operand.vmem [shape: f32[2,128], index: 2, kind: input, shape index: {}]
  %s3 = inlined_call_operand.vmem [shape: f32[512,128], index: 3, kind: output, shape index: {}]
  %s4 = sld [smem:[#allocation0]]
  $region61: #{upsampler_block11.1} parent=0
    _
  %s6 = ssub.s32 1, %s4
  %s7 = scalar_select 0, %s6, %s4
  loop: start=0, step=1, limit=4
  $region2: #{upsampler_block11.1} parent=0 // loop_pre_header
    _
  $region3: #{upsampler_block11.1} parent=0 // loop_header
    %s9 = sphi 0, %s13
    %p10 = scmp.ge.s32.totalorder %s9, 4
    %s16 = sphi 0, %s28
    %s17 = sphi 0, %s24
    %s18 = sphi 0, %s16
    %s19 = sphi 0, %s17
    %s20 = sphi 0, %s18
    %s21 = sphi 0, %s19
    %s35 = sphi 0, %s37
    %s38 = sphi 0, %s35
    %s39 = sphi 0, %s38
    %s55 = sphi 0, %s39
    %s59 = sphi 0, %s59
    %s61 = sphi 0, %s59
    %s62 = sphi 0, %s61
    %s76 = sphi 0, %s62
    %s80 = sphi 0, %s80
    %s82 = sphi 0, %s80
    %s83 = sphi 0, %s82
    %s97 = sphi 0, %s83
    %s105 = sphi 0, %s107
    %s108 = sphi 0, %s105
    %s109 = sphi 0, %s108
    %s125 = sphi 0, %s109
  $region4: #{upsampler_block11.1} parent=0 // loop_header_branch
    %12 = sbr.rel (%p10) target = $region8
  $region5: #{upsampler_block11.1} parent=0 // loop_body
    %s14 = ssub.s32 %s9, 1
    %s15 = ssub.s32 %s9, 2
    %s22 = sadd.s32 1, %s17
    %p23 = scmp.ge.s32.totalorder %s22, 1
    %s24 = scalar_select %p23, 0, %s22
    %s25 = sadd.s32 1, %s16
    %s26 = scalar_select %p23, %s25, %s16
    %p27 = scmp.ge.s32.totalorder %s26, 2
    %s28 = scalar_select %p27, 0, %s26
    %s29 = ssub.s32 1, %s16
    %s30 = smul.u32 %s17, %s29
    %s31 = ssub.s32 1, %s28
    %s32 = smul.u32 %s24, %s31
    %s33 = ssub.s32 %s30, %s32
    %p34 = scmp.eq.s32.totalorder %s33, 0
    %s36 = sadd.s32 %s35, 1
    %s37 = scalar_select %p34, %s35, %s36
    %p40 = pneg %p34
    %p41 = scmp.eq.s32.totalorder %s9, 1
    %p42 = por %p40, %p41
    %p43 = scmp.ne.s32.totalorder %s35, %s38
    %p44 = scmp.eq.s32.totalorder %s9, 0
    %p45 = por %p43, %p44
    %p46 = scmp.ne.s32.totalorder %s35, %s38
    %p47 = scmp.eq.s32.totalorder %s14, 1
    %p48 = por %p46, %p47
    %p49 = scmp.ne.s32.totalorder %s38, %s39
    %p50 = scmp.eq.s32.totalorder %s14, 0
    %p51 = por %p49, %p50
    %p52 = scmp.ne.s32.totalorder %s38, %s39
    %p53 = scmp.eq.s32.totalorder %s15, 1
    %p54 = por %p52, %p53
    %p56 = scmp.ne.s32.totalorder %s39, %s55
    %p57 = scmp.eq.s32.totalorder %s15, 0
    %p58 = por %p56, %p57
    %s60 = sadd.s32 %s59, 1
    %p63 = scmp.eq.s32.totalorder %s9, 1
    %p64 = scmp.ne.s32.totalorder %s59, %s61
    %p65 = scmp.eq.s32.totalorder %s9, 0
    %p66 = por %p64, %p65
    %p67 = scmp.ne.s32.totalorder %s59, %s61
    %p68 = scmp.eq.s32.totalorder %s14, 1
    %p69 = por %p67, %p68
    %p70 = scmp.ne.s32.totalorder %s61, %s62
    %p71 = scmp.eq.s32.totalorder %s14, 0
    %p72 = por %p70, %p71
    %p73 = scmp.ne.s32.totalorder %s61, %s62
    %p74 = scmp.eq.s32.totalorder %s15, 1
    %p75 = por %p73, %p74
    %p77 = scmp.ne.s32.totalorder %s62, %s76
    %p78 = scmp.eq.s32.totalorder %s15, 0
    %p79 = por %p77, %p78
    %s81 = sadd.s32 %s80, 1
    %p84 = scmp.eq.s32.totalorder %s9, 1
    %p85 = scmp.ne.s32.totalorder %s80, %s82
    %p86 = scmp.eq.s32.totalorder %s9, 0
    %p87 = por %p85, %p86
    %p88 = scmp.ne.s32.totalorder %s80, %s82
    %p89 = scmp.eq.s32.totalorder %s14, 1
    %p90 = por %p88, %p89
    %p91 = scmp.ne.s32.totalorder %s82, %s83
    %p92 = scmp.eq.s32.totalorder %s14, 0
    %p93 = por %p91, %p92
    %p94 = scmp.ne.s32.totalorder %s82, %s83
    %p95 = scmp.eq.s32.totalorder %s15, 1
    %p96 = por %p94, %p95
    %p98 = scmp.ne.s32.totalorder %s83, %s97
    %p99 = scmp.eq.s32.totalorder %s15, 0
    %p100 = por %p98, %p99
    %s101 = smul.u32 %s17, %s16
    %s102 = smul.u32 %s24, %s28
    %s103 = ssub.s32 %s101, %s102
    %p104 = scmp.eq.s32.totalorder %s103, 0
    %s106 = sadd.s32 %s105, 1
    %s107 = scalar_select %p104, %s105, %s106
    %p110 = pneg %p104
    %p111 = scmp.eq.s32.totalorder %s9, 1
    %p112 = por %p110, %p111
    %p113 = scmp.ne.s32.totalorder %s105, %s108
    %p114 = scmp.eq.s32.totalorder %s9, 0
    %p115 = por %p113, %p114
    %p116 = scmp.ne.s32.totalorder %s105, %s108
    %p117 = scmp.eq.s32.totalorder %s14, 1
    %p118 = por %p116, %p117
    %p119 = scmp.ne.s32.totalorder %s108, %s109
    %p120 = scmp.eq.s32.totalorder %s14, 0
    %p121 = por %p119, %p120
    %p122 = scmp.ne.s32.totalorder %s108, %s109
    %p123 = scmp.eq.s32.totalorder %s15, 1
    %p124 = por %p122, %p123
    %p126 = scmp.ne.s32.totalorder %s109, %s125
    %p127 = scmp.eq.s32.totalorder %s15, 0
    %p128 = por %p126, %p127
    %p129 = scmp.le.s32.totalorder 1, %s9
    %p130 = scmp.lt.s32.totalorder %s9, 3
    %p131 = pnand %p129, %p130
    %p132 = pneg %p131
    // Predicated region
    $region9: #{upsampler_block11.1} parent=5 // pred_check
      _
    $region10: #{upsampler_block11.1} parent=5 // pred_check_branch
      %134 = sbr.rel (%p131) target = $region12
    $region11: #{upsampler_block11.1} parent=5 // pred_region
      %s135 = ssub.s32 %s9, 1
      // Predicated region
      $region13: #{upsampler_block11.1} parent=11 // pred_check
        %p136 = pneg %p72
      $region14: #{upsampler_block11.1} parent=11 // pred_check_branch
        %138 = sbr.rel (%p136) target = $region16
      $region15: #{upsampler_block11.1} parent=11 // pred_region
        _
      $region16: #{upsampler_block11.1} parent=11 // pred_fallthru
        _
      // Predicated region
      $region17: #{upsampler_block11.1} parent=11 // pred_check
        %p139 = pneg %p93
      $region18: #{upsampler_block11.1} parent=11 // pred_check_branch
        %141 = sbr.rel (%p139) target = $region20
      $region19: #{upsampler_block11.1} parent=11 // pred_region
        _
      $region20: #{upsampler_block11.1} parent=11 // pred_fallthru
        _
    $region12: #{upsampler_block11.1} parent=5 // pred_fallthru
      _
    %p142 = scmp.lt.s32.totalorder %s9, 2
    // Predicated region
    $region21: #{upsampler_block11.1} parent=5 // pred_check
      %p143 = pneg %p142
    $region22: #{upsampler_block11.1} parent=5 // pred_check_branch
      %145 = sbr.rel (%p143) target = $region24
    $region23: #{upsampler_block11.1} parent=5 // pred_region
      // Predicated region
      $region25: #{upsampler_block11.1} parent=23 // pred_check
        %p146 = pneg %p45
      $region26: #{upsampler_block11.1} parent=23 // pred_check_branch
        %148 = sbr.rel (%p146) target = $region28
      $region27: #{upsampler_block11.1} parent=23 // pred_region
        %s149 = ssub.s32 1, %s16
        %s150 = smul.u32 %s17, %s149
        %s151 = smul.u32 64, %s150
        %p152 = scmp.lt.s32.totalorder %s151, 63
        %s153 = scalar_select %p152, %s151, 63
        %s154 = smul.addr %s153, 8
        %s155 = scalar_lea.vmem %s0, %s154
        %s156 = ssub.s32 1, %s16
        %s157 = smul.u32 %s17, %s156
        %s158 = smul.u32 64, %s157
      $region28: #{upsampler_block11.1} parent=23 // pred_fallthru
        _
    $region24: #{upsampler_block11.1} parent=5 // pred_fallthru
      _
    %p159 = scmp.le.s32.totalorder 1, %s9
    %p160 = scmp.lt.s32.totalorder %s9, 3
    %p161 = pnand %p159, %p160
    %p162 = pneg %p161
    // Predicated region
    $region29: #{upsampler_block11.1} parent=5 // pred_check
      _
    $region30: #{upsampler_block11.1} parent=5 // pred_check_branch
      %164 = sbr.rel (%p161) target = $region32
    $region31: #{upsampler_block11.1} parent=5 // pred_region
      %s165 = ssub.s32 %s9, 1
      %s166 = ssub.s32 1, %s18
      %s167 = smul.u32 %s19, %s166
      %s168 = smul.u32 64, %s167
      %p169 = scmp.lt.s32.totalorder %s168, 63
      %s170 = scalar_select %p169, %s168, 63
      %s171 = smul.addr %s170, 8
      %s172 = scalar_lea.vmem %s0, %s171
      %p173 = pneg %p51
      %p174 = pneg %p48
      %p175 = pneg %p72
      %p176 = pneg %p69
      %p177 = pneg %p93
      %p178 = pneg %p90
      %p179 = pneg %p121
      %p180 = pneg %p118
      %s181 = smul.u32 %s19, %s18
      %s182 = smul.u32 64, %s181
      %p183 = scmp.lt.s32.totalorder %s182, 63
      %s184 = scalar_select %p183, %s182, 63
      %s185 = smul.addr %s184, 8
      %s186 = scalar_lea.vmem %s3, %s185
      %s187 = ssub.s32 1, %s18
      %s188 = smul.u32 %s19, %s187
      %s189 = smul.u32 64, %s188
      %p190 = scmp.lt.s32.totalorder %s189, 63
      %s191 = scalar_select %p190, %s189, 63
      %s192 = smul.addr %s191, 8
      %s193 = scalar_lea.vmem %s0, %s192
      %s194 = ssub.s32 1, %s18
      %s195 = smul.u32 %s19, %s194
      %s196 = smul.u32 64, %s195
      %s197 = smul.u32 %s19, %s18
      %s198 = smul.u32 64, %s197
      %p199 = scmp.lt.s32.totalorder %s198, 63
      %s200 = scalar_select %p199, %s198, 63
      %s201 = smul.addr %s200, 8
      %s202 = scalar_lea.vmem %s3, %s201
      %s203 = smul.u32 %s19, %s18
      %s204 = smul.u32 64, %s203
      %p205 = scmp.eq.s32.totalorder %s18, 0
      %p206 = scmp.eq.s32.totalorder %s19, 0
      %p207 = pnand %p205, %p206
      %p208 = pneg %p207
      // Predicated region
      $region33: #{upsampler_block11.1} parent=31 // pred_check
        _
      $region34: #{upsampler_block11.1} parent=31 // pred_check_branch
        %210 = sbr.rel (%p207) target = $region36
      $region35: #{upsampler_block11.1} parent=31 // pred_region
        %211 = vst [vmem:[#allocation2] sm:$0xff] 0.0
      $region36: #{upsampler_block11.1} parent=31 // pred_fallthru
        _
      // Predicated region
      $region37: #{upsampler_block11.1} parent=31 // pred_check
        %p212 = pneg %p205
      $region38: #{upsampler_block11.1} parent=31 // pred_check_branch
        %214 = sbr.rel (%p212) target = $region40
      $region39: #{upsampler_block11.1} parent=31 // pred_region
        %v215 = vld [vmem:[%s193] sm:$0xff]
        %v216 = vld [vmem:[%s193 + $0x8] sm:$0xff]
        %v217 = vld [vmem:[%s193 + $0x10] sm:$0xff]
        %v218 = vld [vmem:[%s193 + $0x18] sm:$0xff]
        %v219 = vld [vmem:[%s193 + $0x20] sm:$0xff]
        %v220 = vld [vmem:[%s193 + $0x28] sm:$0xff]
        %v221 = vld [vmem:[%s193 + $0x30] sm:$0xff]
        %v222 = vld [vmem:[%s193 + $0x38] sm:$0xff]
        %v223 = vld [vmem:[%s193 + $0x40] sm:$0xff]
        %v224 = vld [vmem:[%s193 + $0x48] sm:$0xff]
        %v225 = vld [vmem:[%s193 + $0x50] sm:$0xff]
        %v226 = vld [vmem:[%s193 + $0x58] sm:$0xff]
        %v227 = vld [vmem:[%s193 + $0x60] sm:$0xff]
        %v228 = vld [vmem:[%s193 + $0x68] sm:$0xff]
        %v229 = vld [vmem:[%s193 + $0x70] sm:$0xff]
        %v230 = vld [vmem:[%s193 + $0x78] sm:$0xff]
        %v231 = vld [vmem:[%s193 + $0x80] sm:$0xff]
        %v232 = vld [vmem:[%s193 + $0x88] sm:$0xff]
        %v233 = vld [vmem:[%s193 + $0x90] sm:$0xff]
        %v234 = vld [vmem:[%s193 + $0x98] sm:$0xff]
        %v235 = vld [vmem:[%s193 + $0xa0] sm:$0xff]
        %v236 = vld [vmem:[%s193 + $0xa8] sm:$0xff]
        %v237 = vld [vmem:[%s193 + $0xb0] sm:$0xff]
        %v238 = vld [vmem:[%s193 + $0xb8] sm:$0xff]
        %v239 = vld [vmem:[%s193 + $0xc0] sm:$0xff]
        %v240 = vld [vmem:[%s193 + $0xc8] sm:$0xff]
        %v241 = vld [vmem:[%s193 + $0xd0] sm:$0xff]
        %v242 = vld [vmem:[%s193 + $0xd8] sm:$0xff]
        %v243 = vld [vmem:[%s193 + $0xe0] sm:$0xff]
        %v244 = vld [vmem:[%s193 + $0xe8] sm:$0xff]
        %v245 = vld [vmem:[%s193 + $0xf0] sm:$0xff]
        %v246 = vld [vmem:[%s193 + $0xf8] sm:$0xff]
        %v247 = vld [vmem:[%s193 + $0x100] sm:$0xff]
        %v248 = vld [vmem:[%s193 + $0x108] sm:$0xff]
        %v249 = vld [vmem:[%s193 + $0x110] sm:$0xff]
        %v250 = vld [vmem:[%s193 + $0x118] sm:$0xff]
        %v251 = vld [vmem:[%s193 + $0x120] sm:$0xff]
        %v252 = vld [vmem:[%s193 + $0x128] sm:$0xff]
        %v253 = vld [vmem:[%s193 + $0x130] sm:$0xff]
        %v254 = vld [vmem:[%s193 + $0x138] sm:$0xff]
        %v255 = vld [vmem:[%s193 + $0x140] sm:$0xff]
        %v256 = vld [vmem:[%s193 + $0x148] sm:$0xff]
        %v257 = vld [vmem:[%s193 + $0x150] sm:$0xff]
        %v258 = vld [vmem:[%s193 + $0x158] sm:$0xff]
        %v259 = vld [vmem:[%s193 + $0x160] sm:$0xff]
        %v260 = vld [vmem:[%s193 + $0x168] sm:$0xff]
        %v261 = vld [vmem:[%s193 + $0x170] sm:$0xff]
        %v262 = vld [vmem:[%s193 + $0x178] sm:$0xff]
        %v263 = vld [vmem:[%s193 + $0x180] sm:$0xff]
        %v264 = vld [vmem:[%s193 + $0x188] sm:$0xff]
        %v265 = vld [vmem:[%s193 + $0x190] sm:$0xff]
        %v266 = vld [vmem:[%s193 + $0x198] sm:$0xff]
        %v267 = vld [vmem:[%s193 + $0x1a0] sm:$0xff]
        %v268 = vld [vmem:[%s193 + $0x1a8] sm:$0xff]
        %v269 = vld [vmem:[%s193 + $0x1b0] sm:$0xff]
        %v270 = vld [vmem:[%s193 + $0x1b8] sm:$0xff]
        %v271 = vld [vmem:[%s193 + $0x1c0] sm:$0xff]
        %v272 = vld [vmem:[%s193 + $0x1c8] sm:$0xff]
        %v273 = vld [vmem:[%s193 + $0x1d0] sm:$0xff]
        %v274 = vld [vmem:[%s193 + $0x1d8] sm:$0xff]
        %v275 = vld [vmem:[%s193 + $0x1e0] sm:$0xff]
        %v276 = vld [vmem:[%s193 + $0x1e8] sm:$0xff]
        %v277 = vld [vmem:[%s193 + $0x1f0] sm:$0xff]
        %v278 = vld [vmem:[%s193 + $0x1f8] sm:$0xff]
        %v279 = vld [vmem:[%s1] sm:$0xff]
        %v280 = vld [vmem:[%s1 + $0x8] sm:$0xff]
        %vm281 = vcmask 130048
        %v283 = vsel %vm281, %v215, 0
        %v286 = vsel %vm281, %v216, 0
        %v289 = vsel %vm281, %v217, 0
        %v292 = vsel %vm281, %v218, 0
        %v295 = vsel %vm281, %v219, 0
        %v298 = vsel %vm281, %v220, 0
        %v301 = vsel %vm281, %v221, 0
        %v304 = vsel %vm281, %v222, 0
        %v307 = vsel %vm281, %v223, 0
        %v310 = vsel %vm281, %v224, 0
        %v313 = vsel %vm281, %v225, 0
        %v316 = vsel %vm281, %v226, 0
        %v319 = vsel %vm281, %v227, 0
        %v322 = vsel %vm281, %v228, 0
        %v325 = vsel %vm281, %v229, 0
        %v328 = vsel %vm281, %v230, 0
        %v331 = vsel %vm281, %v231, 0
        %v334 = vsel %vm281, %v232, 0
        %v337 = vsel %vm281, %v233, 0
        %v340 = vsel %vm281, %v234, 0
        %v343 = vsel %vm281, %v235, 0
        %v346 = vsel %vm281, %v236, 0
        %v349 = vsel %vm281, %v237, 0
        %v352 = vsel %vm281, %v238, 0
        %v355 = vsel %vm281, %v239, 0
        %v358 = vsel %vm281, %v240, 0
        %v361 = vsel %vm281, %v241, 0
        %v364 = vsel %vm281, %v242, 0
        %v367 = vsel %vm281, %v243, 0
        %v370 = vsel %vm281, %v244, 0
        %v373 = vsel %vm281, %v245, 0
        %v376 = vsel %vm281, %v246, 0
        %v379 = vsel %vm281, %v247, 0
        %v382 = vsel %vm281, %v248, 0
        %v385 = vsel %vm281, %v249, 0
        %v388 = vsel %vm281, %v250, 0
        %v391 = vsel %vm281, %v251, 0
        %v394 = vsel %vm281, %v252, 0
        %v397 = vsel %vm281, %v253, 0
        %v400 = vsel %vm281, %v254, 0
        %v403 = vsel %vm281, %v255, 0
        %v406 = vsel %vm281, %v256, 0
        %v409 = vsel %vm281, %v257, 0
        %v412 = vsel %vm281, %v258, 0
        %v415 = vsel %vm281, %v259, 0
        %v418 = vsel %vm281, %v260, 0
        %v421 = vsel %vm281, %v261, 0
        %v424 = vsel %vm281, %v262, 0
        %v427 = vsel %vm281, %v263, 0
        %v430 = vsel %vm281, %v264, 0
        %v433 = vsel %vm281, %v265, 0
        %v436 = vsel %vm281, %v266, 0
        %v439 = vsel %vm281, %v267, 0
        %v442 = vsel %vm281, %v268, 0
        %v445 = vsel %vm281, %v269, 0
        %v448 = vsel %vm281, %v270, 0
        %v451 = vsel %vm281, %v271, 0
        %v454 = vsel %vm281, %v272, 0
        %v457 = vsel %vm281, %v273, 0
        %v460 = vsel %vm281, %v274, 0
        %v463 = vsel %vm281, %v275, 0
        %v466 = vsel %vm281, %v276, 0
        %v469 = vsel %vm281, %v277, 0
        %v472 = vsel %vm281, %v278, 0
        %474 = vmatpush.msra.mxu0 0.0
        %475 = vmatpush.msra.mxu0 0.0
        %476 = vmatpush.msra.mxu0 0.0
        %477 = vmatpush.msra.mxu0 0.0
        %478 = vmatpush.msra.mxu0 0.0
        %479 = vmatpush.msra.mxu0 0.0
        %480 = vmatpush.msra.mxu0 0.0
        %481 = vmatpush.msra.mxu0 0.0
        %482 = vmatpush.msra.mxu0 0.0
        %483 = vmatpush.msra.mxu0 0.0
        %484 = vmatpush.msra.mxu0 0.0
        %485 = vmatpush.msra.mxu0 0.0
        %486 = vmatpush.msra.mxu0 0.0
        %487 = vmatpush.msra.mxu0 0.0
        %488 = vmatpush.msra.mxu0 %v280
        %489 = vmatpush.msra.mxu0 %v279
        %490 = vmatmul.f32.gmra.mxu0 %v283
        %v491 = vpop.f32.mrf.mxu0
        %v492 = vadd.f32 0.0, %v491
        %493 = vmatmul.f32.gmra.mxu0 %v286
        %v494 = vpop.f32.mrf.mxu0
        %v495 = vadd.f32 0.0, %v494
        %496 = vmatmul.f32.gmra.mxu0 %v289
        %v497 = vpop.f32.mrf.mxu0
        %v498 = vadd.f32 0.0, %v497
        %499 = vmatmul.f32.gmra.mxu0 %v292
        %v500 = vpop.f32.mrf.mxu0
        %v501 = vadd.f32 0.0, %v500
        %502 = vmatmul.f32.gmra.mxu0 %v295
        %v503 = vpop.f32.mrf.mxu0
        %v504 = vadd.f32 0.0, %v503
        %505 = vmatmul.f32.gmra.mxu0 %v298
        %v506 = vpop.f32.mrf.mxu0
        %v507 = vadd.f32 0.0, %v506
        %508 = vmatmul.f32.gmra.mxu0 %v301
        %v509 = vpop.f32.mrf.mxu0
        %v510 = vadd.f32 0.0, %v509
        %511 = vmatmul.f32.gmra.mxu0 %v304
        %v512 = vpop.f32.mrf.mxu0
        %v513 = vadd.f32 0.0, %v512
        %514 = vmatmul.f32.gmra.mxu0 %v307
        %v515 = vpop.f32.mrf.mxu0
        %v516 = vadd.f32 0.0, %v515
        %517 = vmatmul.f32.gmra.mxu0 %v310
        %v518 = vpop.f32.mrf.mxu0
        %v519 = vadd.f32 0.0, %v518
        %520 = vmatmul.f32.gmra.mxu0 %v313
        %v521 = vpop.f32.mrf.mxu0
        %v522 = vadd.f32 0.0, %v521
        %523 = vmatmul.f32.gmra.mxu0 %v316
        %v524 = vpop.f32.mrf.mxu0
        %v525 = vadd.f32 0.0, %v524
        %526 = vmatmul.f32.gmra.mxu0 %v319
        %v527 = vpop.f32.mrf.mxu0
        %v528 = vadd.f32 0.0, %v527
        %529 = vmatmul.f32.gmra.mxu0 %v322
        %v530 = vpop.f32.mrf.mxu0
        %v531 = vadd.f32 0.0, %v530
        %532 = vmatmul.f32.gmra.mxu0 %v325
        %v533 = vpop.f32.mrf.mxu0
        %v534 = vadd.f32 0.0, %v533
        %535 = vmatmul.f32.gmra.mxu0 %v328
        %v536 = vpop.f32.mrf.mxu0
        %v537 = vadd.f32 0.0, %v536
        %538 = vmatmul.f32.gmra.mxu0 %v331
        %v539 = vpop.f32.mrf.mxu0
        %v540 = vadd.f32 0.0, %v539
        %541 = vmatmul.f32.gmra.mxu0 %v334
        %v542 = vpop.f32.mrf.mxu0
        %v543 = vadd.f32 0.0, %v542
        %544 = vmatmul.f32.gmra.mxu0 %v337
        %v545 = vpop.f32.mrf.mxu0
        %v546 = vadd.f32 0.0, %v545
        %547 = vmatmul.f32.gmra.mxu0 %v340
        %v548 = vpop.f32.mrf.mxu0
        %v549 = vadd.f32 0.0, %v548
        %550 = vmatmul.f32.gmra.mxu0 %v343
        %v551 = vpop.f32.mrf.mxu0
        %v552 = vadd.f32 0.0, %v551
        %553 = vmatmul.f32.gmra.mxu0 %v346
        %v554 = vpop.f32.mrf.mxu0
        %v555 = vadd.f32 0.0, %v554
        %556 = vmatmul.f32.gmra.mxu0 %v349
        %v557 = vpop.f32.mrf.mxu0
        %v558 = vadd.f32 0.0, %v557
        %559 = vmatmul.f32.gmra.mxu0 %v352
        %v560 = vpop.f32.mrf.mxu0
        %v561 = vadd.f32 0.0, %v560
        %562 = vmatmul.f32.gmra.mxu0 %v355
        %v563 = vpop.f32.mrf.mxu0
        %v564 = vadd.f32 0.0, %v563
        %565 = vmatmul.f32.gmra.mxu0 %v358
        %v566 = vpop.f32.mrf.mxu0
        %v567 = vadd.f32 0.0, %v566
        %568 = vmatmul.f32.gmra.mxu0 %v361
        %v569 = vpop.f32.mrf.mxu0
        %v570 = vadd.f32 0.0, %v569
        %571 = vmatmul.f32.gmra.mxu0 %v364
        %v572 = vpop.f32.mrf.mxu0
        %v573 = vadd.f32 0.0, %v572
        %574 = vmatmul.f32.gmra.mxu0 %v367
        %v575 = vpop.f32.mrf.mxu0
        %v576 = vadd.f32 0.0, %v575
        %577 = vmatmul.f32.gmra.mxu0 %v370
        %v578 = vpop.f32.mrf.mxu0
        %v579 = vadd.f32 0.0, %v578
        %580 = vmatmul.f32.gmra.mxu0 %v373
        %v581 = vpop.f32.mrf.mxu0
        %v582 = vadd.f32 0.0, %v581
        %583 = vmatmul.f32.gmra.mxu0 %v376
        %v584 = vpop.f32.mrf.mxu0
        %v585 = vadd.f32 0.0, %v584
        %586 = vmatmul.f32.gmra.mxu0 %v379
        %v587 = vpop.f32.mrf.mxu0
        %v588 = vadd.f32 0.0, %v587
        %589 = vmatmul.f32.gmra.mxu0 %v382
        %v590 = vpop.f32.mrf.mxu0
        %v591 = vadd.f32 0.0, %v590
        %592 = vmatmul.f32.gmra.mxu0 %v385
        %v593 = vpop.f32.mrf.mxu0
        %v594 = vadd.f32 0.0, %v593
        %595 = vmatmul.f32.gmra.mxu0 %v388
        %v596 = vpop.f32.mrf.mxu0
        %v597 = vadd.f32 0.0, %v596
        %598 = vmatmul.f32.gmra.mxu0 %v391
        %v599 = vpop.f32.mrf.mxu0
        %v600 = vadd.f32 0.0, %v599
        %601 = vmatmul.f32.gmra.mxu0 %v394
        %v602 = vpop.f32.mrf.mxu0
        %v603 = vadd.f32 0.0, %v602
        %604 = vmatmul.f32.gmra.mxu0 %v397
        %v605 = vpop.f32.mrf.mxu0
        %v606 = vadd.f32 0.0, %v605
        %607 = vmatmul.f32.gmra.mxu0 %v400
        %v608 = vpop.f32.mrf.mxu0
        %v609 = vadd.f32 0.0, %v608
        %610 = vmatmul.f32.gmra.mxu0 %v403
        %v611 = vpop.f32.mrf.mxu0
        %v612 = vadd.f32 0.0, %v611
        %613 = vmatmul.f32.gmra.mxu0 %v406
        %v614 = vpop.f32.mrf.mxu0
        %v615 = vadd.f32 0.0, %v614
        %616 = vmatmul.f32.gmra.mxu0 %v409
        %v617 = vpop.f32.mrf.mxu0
        %v618 = vadd.f32 0.0, %v617
        %619 = vmatmul.f32.gmra.mxu0 %v412
        %v620 = vpop.f32.mrf.mxu0
        %v621 = vadd.f32 0.0, %v620
        %622 = vmatmul.f32.gmra.mxu0 %v415
        %v623 = vpop.f32.mrf.mxu0
        %v624 = vadd.f32 0.0, %v623
        %625 = vmatmul.f32.gmra.mxu0 %v418
        %v626 = vpop.f32.mrf.mxu0
        %v627 = vadd.f32 0.0, %v626
        %628 = vmatmul.f32.gmra.mxu0 %v421
        %v629 = vpop.f32.mrf.mxu0
        %v630 = vadd.f32 0.0, %v629
        %631 = vmatmul.f32.gmra.mxu0 %v424
        %v632 = vpop.f32.mrf.mxu0
        %v633 = vadd.f32 0.0, %v632
        %634 = vmatmul.f32.gmra.mxu0 %v427
        %v635 = vpop.f32.mrf.mxu0
        %v636 = vadd.f32 0.0, %v635
        %637 = vmatmul.f32.gmra.mxu0 %v430
        %v638 = vpop.f32.mrf.mxu0
        %v639 = vadd.f32 0.0, %v638
        %640 = vmatmul.f32.gmra.mxu0 %v433
        %v641 = vpop.f32.mrf.mxu0
        %v642 = vadd.f32 0.0, %v641
        %643 = vmatmul.f32.gmra.mxu0 %v436
        %v644 = vpop.f32.mrf.mxu0
        %v645 = vadd.f32 0.0, %v644
        %646 = vmatmul.f32.gmra.mxu0 %v439
        %v647 = vpop.f32.mrf.mxu0
        %v648 = vadd.f32 0.0, %v647
        %649 = vmatmul.f32.gmra.mxu0 %v442
        %v650 = vpop.f32.mrf.mxu0
        %v651 = vadd.f32 0.0, %v650
        %652 = vmatmul.f32.gmra.mxu0 %v445
        %v653 = vpop.f32.mrf.mxu0
        %v654 = vadd.f32 0.0, %v653
        %655 = vmatmul.f32.gmra.mxu0 %v448
        %v656 = vpop.f32.mrf.mxu0
        %v657 = vadd.f32 0.0, %v656
        %658 = vmatmul.f32.gmra.mxu0 %v451
        %v659 = vpop.f32.mrf.mxu0
        %v660 = vadd.f32 0.0, %v659
        %661 = vmatmul.f32.gmra.mxu0 %v454
        %v662 = vpop.f32.mrf.mxu0
        %v663 = vadd.f32 0.0, %v662
        %664 = vmatmul.f32.gmra.mxu0 %v457
        %v665 = vpop.f32.mrf.mxu0
        %v666 = vadd.f32 0.0, %v665
        %667 = vmatmul.f32.gmra.mxu0 %v460
        %v668 = vpop.f32.mrf.mxu0
        %v669 = vadd.f32 0.0, %v668
        %670 = vmatmul.f32.gmra.mxu0 %v463
        %v671 = vpop.f32.mrf.mxu0
        %v672 = vadd.f32 0.0, %v671
        %673 = vmatmul.f32.gmra.mxu0 %v466
        %v674 = vpop.f32.mrf.mxu0
        %v675 = vadd.f32 0.0, %v674
        %676 = vmatmul.f32.gmra.mxu0 %v469
        %v677 = vpop.f32.mrf.mxu0
        %v678 = vadd.f32 0.0, %v677
        %679 = vmatmul.f32.gmra.mxu0 %v472
        %v680 = vpop.f32.mrf.mxu0
        %v681 = vadd.f32 0.0, %v680
        %682 = vdwg.mxu0
        %s683 = smul.u32 %s19, 512
        %s684 = scalar_lea.vmem [#allocation4], %s683
        %685 = vst [vmem:[%s684] sm:$0xff] %v492
        %686 = vst [vmem:[%s684 + $0x8] sm:$0xff] %v495
        %687 = vst [vmem:[%s684 + $0x10] sm:$0xff] %v498
        %688 = vst [vmem:[%s684 + $0x18] sm:$0xff] %v501
        %689 = vst [vmem:[%s684 + $0x20] sm:$0xff] %v504
        %690 = vst [vmem:[%s684 + $0x28] sm:$0xff] %v507
        %691 = vst [vmem:[%s684 + $0x30] sm:$0xff] %v510
        %692 = vst [vmem:[%s684 + $0x38] sm:$0xff] %v513
        %693 = vst [vmem:[%s684 + $0x40] sm:$0xff] %v516
        %694 = vst [vmem:[%s684 + $0x48] sm:$0xff] %v519
        %695 = vst [vmem:[%s684 + $0x50] sm:$0xff] %v522
        %696 = vst [vmem:[%s684 + $0x58] sm:$0xff] %v525
        %697 = vst [vmem:[%s684 + $0x60] sm:$0xff] %v528
        %698 = vst [vmem:[%s684 + $0x68] sm:$0xff] %v531
        %699 = vst [vmem:[%s684 + $0x70] sm:$0xff] %v534
        %700 = vst [vmem:[%s684 + $0x78] sm:$0xff] %v537
        %701 = vst [vmem:[%s684 + $0x80] sm:$0xff] %v540
        %702 = vst [vmem:[%s684 + $0x88] sm:$0xff] %v543
        %703 = vst [vmem:[%s684 + $0x90] sm:$0xff] %v546
        %704 = vst [vmem:[%s684 + $0x98] sm:$0xff] %v549
        %705 = vst [vmem:[%s684 + $0xa0] sm:$0xff] %v552
        %706 = vst [vmem:[%s684 + $0xa8] sm:$0xff] %v555
        %707 = vst [vmem:[%s684 + $0xb0] sm:$0xff] %v558
        %708 = vst [vmem:[%s684 + $0xb8] sm:$0xff] %v561
        %709 = vst [vmem:[%s684 + $0xc0] sm:$0xff] %v564
        %710 = vst [vmem:[%s684 + $0xc8] sm:$0xff] %v567
        %711 = vst [vmem:[%s684 + $0xd0] sm:$0xff] %v570
        %712 = vst [vmem:[%s684 + $0xd8] sm:$0xff] %v573
        %713 = vst [vmem:[%s684 + $0xe0] sm:$0xff] %v576
        %714 = vst [vmem:[%s684 + $0xe8] sm:$0xff] %v579
        %715 = vst [vmem:[%s684 + $0xf0] sm:$0xff] %v582
        %716 = vst [vmem:[%s684 + $0xf8] sm:$0xff] %v585
        %717 = vst [vmem:[%s684 + $0x100] sm:$0xff] %v588
        %718 = vst [vmem:[%s684 + $0x108] sm:$0xff] %v591
        %719 = vst [vmem:[%s684 + $0x110] sm:$0xff] %v594
        %720 = vst [vmem:[%s684 + $0x118] sm:$0xff] %v597
        %721 = vst [vmem:[%s684 + $0x120] sm:$0xff] %v600
        %722 = vst [vmem:[%s684 + $0x128] sm:$0xff] %v603
        %723 = vst [vmem:[%s684 + $0x130] sm:$0xff] %v606
        %724 = vst [vmem:[%s684 + $0x138] sm:$0xff] %v609
        %725 = vst [vmem:[%s684 + $0x140] sm:$0xff] %v612
        %726 = vst [vmem:[%s684 + $0x148] sm:$0xff] %v615
        %727 = vst [vmem:[%s684 + $0x150] sm:$0xff] %v618
        %728 = vst [vmem:[%s684 + $0x158] sm:$0xff] %v621
        %729 = vst [vmem:[%s684 + $0x160] sm:$0xff] %v624
        %730 = vst [vmem:[%s684 + $0x168] sm:$0xff] %v627
        %731 = vst [vmem:[%s684 + $0x170] sm:$0xff] %v630
        %732 = vst [vmem:[%s684 + $0x178] sm:$0xff] %v633
        %733 = vst [vmem:[%s684 + $0x180] sm:$0xff] %v636
        %734 = vst [vmem:[%s684 + $0x188] sm:$0xff] %v639
        %735 = vst [vmem:[%s684 + $0x190] sm:$0xff] %v642
        %736 = vst [vmem:[%s684 + $0x198] sm:$0xff] %v645
        %737 = vst [vmem:[%s684 + $0x1a0] sm:$0xff] %v648
        %738 = vst [vmem:[%s684 + $0x1a8] sm:$0xff] %v651
        %739 = vst [vmem:[%s684 + $0x1b0] sm:$0xff] %v654
        %740 = vst [vmem:[%s684 + $0x1b8] sm:$0xff] %v657
        %741 = vst [vmem:[%s684 + $0x1c0] sm:$0xff] %v660
        %742 = vst [vmem:[%s684 + $0x1c8] sm:$0xff] %v663
        %743 = vst [vmem:[%s684 + $0x1d0] sm:$0xff] %v666
        %744 = vst [vmem:[%s684 + $0x1d8] sm:$0xff] %v669
        %745 = vst [vmem:[%s684 + $0x1e0] sm:$0xff] %v672
        %746 = vst [vmem:[%s684 + $0x1e8] sm:$0xff] %v675
        %747 = vst [vmem:[%s684 + $0x1f0] sm:$0xff] %v678
        %748 = vst [vmem:[%s684 + $0x1f8] sm:$0xff] %v681
        %v749 = vld [vmem:[#allocation2] sm:$0x1]
        %v750 = vadd.f32 %v492, %v495
        %v751 = vadd.f32 %v750, %v498
        %v752 = vadd.f32 %v751, %v501
        %v753 = vadd.f32 %v752, %v504
        %v754 = vadd.f32 %v753, %v507
        %v755 = vadd.f32 %v754, %v510
        %v756 = vadd.f32 %v755, %v513
        %v757 = vadd.f32 %v756, %v516
        %v758 = vadd.f32 %v757, %v519
        %v759 = vadd.f32 %v758, %v522
        %v760 = vadd.f32 %v759, %v525
        %v761 = vadd.f32 %v760, %v528
        %v762 = vadd.f32 %v761, %v531
        %v763 = vadd.f32 %v762, %v534
        %v764 = vadd.f32 %v763, %v537
        %v765 = vadd.f32 %v764, %v540
        %v766 = vadd.f32 %v765, %v543
        %v767 = vadd.f32 %v766, %v546
        %v768 = vadd.f32 %v767, %v549
        %v769 = vadd.f32 %v768, %v552
        %v770 = vadd.f32 %v769, %v555
        %v771 = vadd.f32 %v770, %v558
        %v772 = vadd.f32 %v771, %v561
        %v773 = vadd.f32 %v772, %v564
        %v774 = vadd.f32 %v773, %v567
        %v775 = vadd.f32 %v774, %v570
        %v776 = vadd.f32 %v775, %v573
        %v777 = vadd.f32 %v776, %v576
        %v778 = vadd.f32 %v777, %v579
        %v779 = vadd.f32 %v778, %v582
        %v780 = vadd.f32 %v779, %v585
        %v781 = vadd.f32 %v780, %v588
        %v782 = vadd.f32 %v781, %v591
        %v783 = vadd.f32 %v782, %v594
        %v784 = vadd.f32 %v783, %v597
        %v785 = vadd.f32 %v784, %v600
        %v786 = vadd.f32 %v785, %v603
        %v787 = vadd.f32 %v786, %v606
        %v788 = vadd.f32 %v787, %v609
        %v789 = vadd.f32 %v788, %v612
        %v790 = vadd.f32 %v789, %v615
        %v791 = vadd.f32 %v790, %v618
        %v792 = vadd.f32 %v791, %v621
        %v793 = vadd.f32 %v792, %v624
        %v794 = vadd.f32 %v793, %v627
        %v795 = vadd.f32 %v794, %v630
        %v796 = vadd.f32 %v795, %v633
        %v797 = vadd.f32 %v796, %v636
        %v798 = vadd.f32 %v797, %v639
        %v799 = vadd.f32 %v798, %v642
        %v800 = vadd.f32 %v799, %v645
        %v801 = vadd.f32 %v800, %v648
        %v802 = vadd.f32 %v801, %v651
        %v803 = vadd.f32 %v802, %v654
        %v804 = vadd.f32 %v803, %v657
        %v805 = vadd.f32 %v804, %v660
        %v806 = vadd.f32 %v805, %v663
        %v807 = vadd.f32 %v806, %v666
        %v808 = vadd.f32 %v807, %v669
        %v809 = vadd.f32 %v808, %v672
        %v810 = vadd.f32 %v809, %v675
        %v811 = vadd.f32 %v810, %v678
        %v812 = vadd.f32 %v811, %v681
        %v813 = vrot.slane %v812, 4
        %v814 = vadd.f32 %v812, %v813
        %v815 = vrot.slane %v814, 2
        %v816 = vadd.f32 %v814, %v815
        %v817 = vrot.slane %v816, 1
        %v818 = vadd.f32 %v816, %v817
        %v819 = vadd.f32 %v749, %v818
        %820 = vst [vmem:[#allocation2] sm:$0x1] %v819
        %v821 = vld [vmem:[#allocation2 + $0x1] sm:$0x1]
        %v822 = vmul.f32 %v492, %v492
        %v823 = vmul.f32 %v495, %v495
        %v824 = vmul.f32 %v498, %v498
        %v825 = vmul.f32 %v501, %v501
        %v826 = vmul.f32 %v504, %v504
        %v827 = vmul.f32 %v507, %v507
        %v828 = vmul.f32 %v510, %v510
        %v829 = vmul.f32 %v513, %v513
        %v830 = vmul.f32 %v516, %v516
        %v831 = vmul.f32 %v519, %v519
        %v832 = vmul.f32 %v522, %v522
        %v833 = vmul.f32 %v525, %v525
        %v834 = vmul.f32 %v528, %v528
        %v835 = vmul.f32 %v531, %v531
        %v836 = vmul.f32 %v534, %v534
        %v837 = vmul.f32 %v537, %v537
        %v838 = vmul.f32 %v540, %v540
        %v839 = vmul.f32 %v543, %v543
        %v840 = vmul.f32 %v546, %v546
        %v841 = vmul.f32 %v549, %v549
        %v842 = vmul.f32 %v552, %v552
        %v843 = vmul.f32 %v555, %v555
        %v844 = vmul.f32 %v558, %v558
        %v845 = vmul.f32 %v561, %v561
        %v846 = vmul.f32 %v564, %v564
        %v847 = vmul.f32 %v567, %v567
        %v848 = vmul.f32 %v570, %v570
        %v849 = vmul.f32 %v573, %v573
        %v850 = vmul.f32 %v576, %v576
        %v851 = vmul.f32 %v579, %v579
        %v852 = vmul.f32 %v582, %v582
        %v853 = vmul.f32 %v585, %v585
        %v854 = vmul.f32 %v588, %v588
        %v855 = vmul.f32 %v591, %v591
        %v856 = vmul.f32 %v594, %v594
        %v857 = vmul.f32 %v597, %v597
        %v858 = vmul.f32 %v600, %v600
        %v859 = vmul.f32 %v603, %v603
        %v860 = vmul.f32 %v606, %v606
        %v861 = vmul.f32 %v609, %v609
        %v862 = vmul.f32 %v612, %v612
        %v863 = vmul.f32 %v615, %v615
        %v864 = vmul.f32 %v618, %v618
        %v865 = vmul.f32 %v621, %v621
        %v866 = vmul.f32 %v624, %v624
        %v867 = vmul.f32 %v627, %v627
        %v868 = vmul.f32 %v630, %v630
        %v869 = vmul.f32 %v633, %v633
        %v870 = vmul.f32 %v636, %v636
        %v871 = vmul.f32 %v639, %v639
        %v872 = vmul.f32 %v642, %v642
        %v873 = vmul.f32 %v645, %v645
        %v874 = vmul.f32 %v648, %v648
        %v875 = vmul.f32 %v651, %v651
        %v876 = vmul.f32 %v654, %v654
        %v877 = vmul.f32 %v657, %v657
        %v878 = vmul.f32 %v660, %v660
        %v879 = vmul.f32 %v663, %v663
        %v880 = vmul.f32 %v666, %v666
        %v881 = vmul.f32 %v669, %v669
        %v882 = vmul.f32 %v672, %v672
        %v883 = vmul.f32 %v675, %v675
        %v884 = vmul.f32 %v678, %v678
        %v885 = vmul.f32 %v681, %v681
        %v886 = vadd.f32 %v822, %v823
        %v887 = vadd.f32 %v886, %v824
        %v888 = vadd.f32 %v887, %v825
        %v889 = vadd.f32 %v888, %v826
        %v890 = vadd.f32 %v889, %v827
        %v891 = vadd.f32 %v890, %v828
        %v892 = vadd.f32 %v891, %v829
        %v893 = vadd.f32 %v892, %v830
        %v894 = vadd.f32 %v893, %v831
        %v895 = vadd.f32 %v894, %v832
        %v896 = vadd.f32 %v895, %v833
        %v897 = vadd.f32 %v896, %v834
        %v898 = vadd.f32 %v897, %v835
        %v899 = vadd.f32 %v898, %v836
        %v900 = vadd.f32 %v899, %v837
        %v901 = vadd.f32 %v900, %v838
        %v902 = vadd.f32 %v901, %v839
        %v903 = vadd.f32 %v902, %v840
        %v904 = vadd.f32 %v903, %v841
        %v905 = vadd.f32 %v904, %v842
        %v906 = vadd.f32 %v905, %v843
        %v907 = vadd.f32 %v906, %v844
        %v908 = vadd.f32 %v907, %v845
        %v909 = vadd.f32 %v908, %v846
        %v910 = vadd.f32 %v909, %v847
        %v911 = vadd.f32 %v910, %v848
        %v912 = vadd.f32 %v911, %v849
        %v913 = vadd.f32 %v912, %v850
        %v914 = vadd.f32 %v913, %v851
        %v915 = vadd.f32 %v914, %v852
        %v916 = vadd.f32 %v915, %v853
        %v917 = vadd.f32 %v916, %v854
        %v918 = vadd.f32 %v917, %v855
        %v919 = vadd.f32 %v918, %v856
        %v920 = vadd.f32 %v919, %v857
        %v921 = vadd.f32 %v920, %v858
        %v922 = vadd.f32 %v921, %v859
        %v923 = vadd.f32 %v922, %v860
        %v924 = vadd.f32 %v923, %v861
        %v925 = vadd.f32 %v924, %v862
        %v926 = vadd.f32 %v925, %v863
        %v927 = vadd.f32 %v926, %v864
        %v928 = vadd.f32 %v927, %v865
        %v929 = vadd.f32 %v928, %v866
        %v930 = vadd.f32 %v929, %v867
        %v931 = vadd.f32 %v930, %v868
        %v932 = vadd.f32 %v931, %v869
        %v933 = vadd.f32 %v932, %v870
        %v934 = vadd.f32 %v933, %v871
        %v935 = vadd.f32 %v934, %v872
        %v936 = vadd.f32 %v935, %v873
        %v937 = vadd.f32 %v936, %v874
        %v938 = vadd.f32 %v937, %v875
        %v939 = vadd.f32 %v938, %v876
        %v940 = vadd.f32 %v939, %v877
        %v941 = vadd.f32 %v940, %v878
        %v942 = vadd.f32 %v941, %v879
        %v943 = vadd.f32 %v942, %v880
        %v944 = vadd.f32 %v943, %v881
        %v945 = vadd.f32 %v944, %v882
        %v946 = vadd.f32 %v945, %v883
        %v947 = vadd.f32 %v946, %v884
        %v948 = vadd.f32 %v947, %v885
        %v949 = vrot.slane %v948, 4
        %v950 = vadd.f32 %v948, %v949
        %v951 = vrot.slane %v950, 2
        %v952 = vadd.f32 %v950, %v951
        %v953 = vrot.slane %v952, 1
        %v954 = vadd.f32 %v952, %v953
        %v955 = vadd.f32 %v821, %v954
        %956 = vst [vmem:[#allocation2 + $0x1] sm:$0x1] %v955
      $region40: #{upsampler_block11.1} parent=31 // pred_fallthru
        _
      %p957 = scmp.eq.s32.totalorder %s18, 1
      %p958 = pnand %p957, %p206
      %p959 = pneg %p958
      // Predicated region
      $region41: #{upsampler_block11.1} parent=31 // pred_check
        _
      $region42: #{upsampler_block11.1} parent=31 // pred_check_branch
        %961 = sbr.rel (%p958) target = $region44
      $region43: #{upsampler_block11.1} parent=31 // pred_region
        %v962 = vld [vmem:[#allocation2] sm:$0xff]
        %963 = vrot.lane.b32.xlu0 %v962, 8
        %v964 = vpop.permute.xlu0 %963
        %v965 = vadd.f32 %v962, %v964
        %966 = vrot.lane.b32.xlu0 %v965, 16
        %v967 = vpop.permute.xlu0 %966
        %v968 = vadd.f32 %v965, %v967
        %969 = vrot.lane.b32.xlu0 %v968, 32
        %v970 = vpop.permute.xlu0 %969
        %v971 = vadd.f32 %v968, %v970
        %972 = vrot.lane.b32.xlu0 %v971, 64
        %v973 = vpop.permute.xlu0 %972
        %v974 = vadd.f32 %v971, %v973
        %v975 = vmul.f32 %v974, 0.00012207031
        %v976 = vmul.f32 %v975, %v975
        %v978 = vrot.slane %v976, 7
        %v980 = vsub.f32 %v975, %v978
        %v981 = vmax.f32 %v980, 0.0
        %v982 = vld [vmem:[%s2] sm:$0x1]
        %v983 = vadd.f32 %v981, 0.001
        %v984 = vrsqrt.pop %v983
        %v985 = vmul.f32 %v984, %v983
        %v986 = vmul.f32 %v985, %v984
        %v987 = vmul.f32 0.5, %v986
        %v988 = vsub.f32 1.5, %v987
        %v989 = vmul.f32 %v984, %v988
        %vm990 = vweird.f32 %v983
        %vm991 = vweird.f32 %v984
        %vm992 = vmor %vm990, %vm991
        %v993 = vsel %vm992, %v984, %v989
        %v995 = vrot.slane %v993, 1
        %v997 = vmul.f32 %v982, %v995
        %998 = vst [vmem:[#allocation3] sm:$0x1] %v997
        %v999 = vld [vmem:[%s2 + $0x1] sm:$0x1]
        %v1000 = vmul.f32 %v975, %v997
        %v1001 = vsub.f32 %v999, %v1000
        %1002 = vst [vmem:[#allocation3 + $0x1] sm:$0x1] %v1001
      $region44: #{upsampler_block11.1} parent=31 // pred_fallthru
        _
      // Predicated region
      $region45: #{upsampler_block11.1} parent=31 // pred_check
        %p1003 = pneg %p957
      $region46: #{upsampler_block11.1} parent=31 // pred_check_branch
        %1005 = sbr.rel (%p1003) target = $region48
      $region47: #{upsampler_block11.1} parent=31 // pred_region
        %s1006 = smul.u32 %s19, 512
        %s1007 = scalar_lea.vmem [#allocation4], %s1006
        %v1008 = vld [vmem:[%s1007] sm:$0xff]
        %v1009 = vld [vmem:[%s1007 + $0x8] sm:$0xff]
        %v1010 = vld [vmem:[%s1007 + $0x10] sm:$0xff]
        %v1011 = vld [vmem:[%s1007 + $0x18] sm:$0xff]
        %v1012 = vld [vmem:[%s1007 + $0x20] sm:$0xff]
        %v1013 = vld [vmem:[%s1007 + $0x28] sm:$0xff]
        %v1014 = vld [vmem:[%s1007 + $0x30] sm:$0xff]
        %v1015 = vld [vmem:[%s1007 + $0x38] sm:$0xff]
        %v1016 = vld [vmem:[%s1007 + $0x40] sm:$0xff]
        %v1017 = vld [vmem:[%s1007 + $0x48] sm:$0xff]
        %v1018 = vld [vmem:[%s1007 + $0x50] sm:$0xff]
        %v1019 = vld [vmem:[%s1007 + $0x58] sm:$0xff]
        %v1020 = vld [vmem:[%s1007 + $0x60] sm:$0xff]
        %v1021 = vld [vmem:[%s1007 + $0x68] sm:$0xff]
        %v1022 = vld [vmem:[%s1007 + $0x70] sm:$0xff]
        %v1023 = vld [vmem:[%s1007 + $0x78] sm:$0xff]
        %v1024 = vld [vmem:[%s1007 + $0x80] sm:$0xff]
        %v1025 = vld [vmem:[%s1007 + $0x88] sm:$0xff]
        %v1026 = vld [vmem:[%s1007 + $0x90] sm:$0xff]
        %v1027 = vld [vmem:[%s1007 + $0x98] sm:$0xff]
        %v1028 = vld [vmem:[%s1007 + $0xa0] sm:$0xff]
        %v1029 = vld [vmem:[%s1007 + $0xa8] sm:$0xff]
        %v1030 = vld [vmem:[%s1007 + $0xb0] sm:$0xff]
        %v1031 = vld [vmem:[%s1007 + $0xb8] sm:$0xff]
        %v1032 = vld [vmem:[%s1007 + $0xc0] sm:$0xff]
        %v1033 = vld [vmem:[%s1007 + $0xc8] sm:$0xff]
        %v1034 = vld [vmem:[%s1007 + $0xd0] sm:$0xff]
        %v1035 = vld [vmem:[%s1007 + $0xd8] sm:$0xff]
        %v1036 = vld [vmem:[%s1007 + $0xe0] sm:$0xff]
        %v1037 = vld [vmem:[%s1007 + $0xe8] sm:$0xff]
        %v1038 = vld [vmem:[%s1007 + $0xf0] sm:$0xff]
        %v1039 = vld [vmem:[%s1007 + $0xf8] sm:$0xff]
        %v1040 = vld [vmem:[%s1007 + $0x100] sm:$0xff]
        %v1041 = vld [vmem:[%s1007 + $0x108] sm:$0xff]
        %v1042 = vld [vmem:[%s1007 + $0x110] sm:$0xff]
        %v1043 = vld [vmem:[%s1007 + $0x118] sm:$0xff]
        %v1044 = vld [vmem:[%s1007 + $0x120] sm:$0xff]
        %v1045 = vld [vmem:[%s1007 + $0x128] sm:$0xff]
        %v1046 = vld [vmem:[%s1007 + $0x130] sm:$0xff]
        %v1047 = vld [vmem:[%s1007 + $0x138] sm:$0xff]
        %v1048 = vld [vmem:[%s1007 + $0x140] sm:$0xff]
        %v1049 = vld [vmem:[%s1007 + $0x148] sm:$0xff]
        %v1050 = vld [vmem:[%s1007 + $0x150] sm:$0xff]
        %v1051 = vld [vmem:[%s1007 + $0x158] sm:$0xff]
        %v1052 = vld [vmem:[%s1007 + $0x160] sm:$0xff]
        %v1053 = vld [vmem:[%s1007 + $0x168] sm:$0xff]
        %v1054 = vld [vmem:[%s1007 + $0x170] sm:$0xff]
        %v1055 = vld [vmem:[%s1007 + $0x178] sm:$0xff]
        %v1056 = vld [vmem:[%s1007 + $0x180] sm:$0xff]
        %v1057 = vld [vmem:[%s1007 + $0x188] sm:$0xff]
        %v1058 = vld [vmem:[%s1007 + $0x190] sm:$0xff]
        %v1059 = vld [vmem:[%s1007 + $0x198] sm:$0xff]
        %v1060 = vld [vmem:[%s1007 + $0x1a0] sm:$0xff]
        %v1061 = vld [vmem:[%s1007 + $0x1a8] sm:$0xff]
        %v1062 = vld [vmem:[%s1007 + $0x1b0] sm:$0xff]
        %v1063 = vld [vmem:[%s1007 + $0x1b8] sm:$0xff]
        %v1064 = vld [vmem:[%s1007 + $0x1c0] sm:$0xff]
        %v1065 = vld [vmem:[%s1007 + $0x1c8] sm:$0xff]
        %v1066 = vld [vmem:[%s1007 + $0x1d0] sm:$0xff]
        %v1067 = vld [vmem:[%s1007 + $0x1d8] sm:$0xff]
        %v1068 = vld [vmem:[%s1007 + $0x1e0] sm:$0xff]
        %v1069 = vld [vmem:[%s1007 + $0x1e8] sm:$0xff]
        %v1070 = vld [vmem:[%s1007 + $0x1f0] sm:$0xff]
        %v1071 = vld [vmem:[%s1007 + $0x1f8] sm:$0xff]
        %v1072 = vld [vmem:[#allocation3] sm:$0x1]
        %v1073 = vperm.slane %v1072, 0
        %v1074 = vmul.f32 %v1008, %v1073
        %v1075 = vmul.f32 %v1009, %v1073
        %v1076 = vmul.f32 %v1010, %v1073
        %v1077 = vmul.f32 %v1011, %v1073
        %v1078 = vmul.f32 %v1012, %v1073
        %v1079 = vmul.f32 %v1013, %v1073
        %v1080 = vmul.f32 %v1014, %v1073
        %v1081 = vmul.f32 %v1015, %v1073
        %v1082 = vmul.f32 %v1016, %v1073
        %v1083 = vmul.f32 %v1017, %v1073
        %v1084 = vmul.f32 %v1018, %v1073
        %v1085 = vmul.f32 %v1019, %v1073
        %v1086 = vmul.f32 %v1020, %v1073
        %v1087 = vmul.f32 %v1021, %v1073
        %v1088 = vmul.f32 %v1022, %v1073
        %v1089 = vmul.f32 %v1023, %v1073
        %v1090 = vmul.f32 %v1024, %v1073
        %v1091 = vmul.f32 %v1025, %v1073
        %v1092 = vmul.f32 %v1026, %v1073
        %v1093 = vmul.f32 %v1027, %v1073
        %v1094 = vmul.f32 %v1028, %v1073
        %v1095 = vmul.f32 %v1029, %v1073
        %v1096 = vmul.f32 %v1030, %v1073
        %v1097 = vmul.f32 %v1031, %v1073
        %v1098 = vmul.f32 %v1032, %v1073
        %v1099 = vmul.f32 %v1033, %v1073
        %v1100 = vmul.f32 %v1034, %v1073
        %v1101 = vmul.f32 %v1035, %v1073
        %v1102 = vmul.f32 %v1036, %v1073
        %v1103 = vmul.f32 %v1037, %v1073
        %v1104 = vmul.f32 %v1038, %v1073
        %v1105 = vmul.f32 %v1039, %v1073
        %v1106 = vmul.f32 %v1040, %v1073
        %v1107 = vmul.f32 %v1041, %v1073
        %v1108 = vmul.f32 %v1042, %v1073
        %v1109 = vmul.f32 %v1043, %v1073
        %v1110 = vmul.f32 %v1044, %v1073
        %v1111 = vmul.f32 %v1045, %v1073
        %v1112 = vmul.f32 %v1046, %v1073
        %v1113 = vmul.f32 %v1047, %v1073
        %v1114 = vmul.f32 %v1048, %v1073
        %v1115 = vmul.f32 %v1049, %v1073
        %v1116 = vmul.f32 %v1050, %v1073
        %v1117 = vmul.f32 %v1051, %v1073
        %v1118 = vmul.f32 %v1052, %v1073
        %v1119 = vmul.f32 %v1053, %v1073
        %v1120 = vmul.f32 %v1054, %v1073
        %v1121 = vmul.f32 %v1055, %v1073
        %v1122 = vmul.f32 %v1056, %v1073
        %v1123 = vmul.f32 %v1057, %v1073
        %v1124 = vmul.f32 %v1058, %v1073
        %v1125 = vmul.f32 %v1059, %v1073
        %v1126 = vmul.f32 %v1060, %v1073
        %v1127 = vmul.f32 %v1061, %v1073
        %v1128 = vmul.f32 %v1062, %v1073
        %v1129 = vmul.f32 %v1063, %v1073
        %v1130 = vmul.f32 %v1064, %v1073
        %v1131 = vmul.f32 %v1065, %v1073
        %v1132 = vmul.f32 %v1066, %v1073
        %v1133 = vmul.f32 %v1067, %v1073
        %v1134 = vmul.f32 %v1068, %v1073
        %v1135 = vmul.f32 %v1069, %v1073
        %v1136 = vmul.f32 %v1070, %v1073
        %v1137 = vmul.f32 %v1071, %v1073
        %v1138 = vld [vmem:[#allocation3 + $0x1] sm:$0x1]
        %v1139 = vperm.slane %v1138, 0
        %v1140 = vadd.f32 %v1074, %v1139
        %v1141 = vadd.f32 %v1075, %v1139
        %v1142 = vadd.f32 %v1076, %v1139
        %v1143 = vadd.f32 %v1077, %v1139
        %v1144 = vadd.f32 %v1078, %v1139
        %v1145 = vadd.f32 %v1079, %v1139
        %v1146 = vadd.f32 %v1080, %v1139
        %v1147 = vadd.f32 %v1081, %v1139
        %v1148 = vadd.f32 %v1082, %v1139
        %v1149 = vadd.f32 %v1083, %v1139
        %v1150 = vadd.f32 %v1084, %v1139
        %v1151 = vadd.f32 %v1085, %v1139
        %v1152 = vadd.f32 %v1086, %v1139
        %v1153 = vadd.f32 %v1087, %v1139
        %v1154 = vadd.f32 %v1088, %v1139
        %v1155 = vadd.f32 %v1089, %v1139
        %v1156 = vadd.f32 %v1090, %v1139
        %v1157 = vadd.f32 %v1091, %v1139
        %v1158 = vadd.f32 %v1092, %v1139
        %v1159 = vadd.f32 %v1093, %v1139
        %v1160 = vadd.f32 %v1094, %v1139
        %v1161 = vadd.f32 %v1095, %v1139
        %v1162 = vadd.f32 %v1096, %v1139
        %v1163 = vadd.f32 %v1097, %v1139
        %v1164 = vadd.f32 %v1098, %v1139
        %v1165 = vadd.f32 %v1099, %v1139
        %v1166 = vadd.f32 %v1100, %v1139
        %v1167 = vadd.f32 %v1101, %v1139
        %v1168 = vadd.f32 %v1102, %v1139
        %v1169 = vadd.f32 %v1103, %v1139
        %v1170 = vadd.f32 %v1104, %v1139
        %v1171 = vadd.f32 %v1105, %v1139
        %v1172 = vadd.f32 %v1106, %v1139
        %v1173 = vadd.f32 %v1107, %v1139
        %v1174 = vadd.f32 %v1108, %v1139
        %v1175 = vadd.f32 %v1109, %v1139
        %v1176 = vadd.f32 %v1110, %v1139
        %v1177 = vadd.f32 %v1111, %v1139
        %v1178 = vadd.f32 %v1112, %v1139
        %v1179 = vadd.f32 %v1113, %v1139
        %v1180 = vadd.f32 %v1114, %v1139
        %v1181 = vadd.f32 %v1115, %v1139
        %v1182 = vadd.f32 %v1116, %v1139
        %v1183 = vadd.f32 %v1117, %v1139
        %v1184 = vadd.f32 %v1118, %v1139
        %v1185 = vadd.f32 %v1119, %v1139
        %v1186 = vadd.f32 %v1120, %v1139
        %v1187 = vadd.f32 %v1121, %v1139
        %v1188 = vadd.f32 %v1122, %v1139
        %v1189 = vadd.f32 %v1123, %v1139
        %v1190 = vadd.f32 %v1124, %v1139
        %v1191 = vadd.f32 %v1125, %v1139
        %v1192 = vadd.f32 %v1126, %v1139
        %v1193 = vadd.f32 %v1127, %v1139
        %v1194 = vadd.f32 %v1128, %v1139
        %v1195 = vadd.f32 %v1129, %v1139
        %v1196 = vadd.f32 %v1130, %v1139
        %v1197 = vadd.f32 %v1131, %v1139
        %v1198 = vadd.f32 %v1132, %v1139
        %v1199 = vadd.f32 %v1133, %v1139
        %v1200 = vadd.f32 %v1134, %v1139
        %v1201 = vadd.f32 %v1135, %v1139
        %v1202 = vadd.f32 %v1136, %v1139
        %v1203 = vadd.f32 %v1137, %v1139
        %v1204 = vmax.f32 %v1140, 0.0
        %v1205 = vmax.f32 %v1141, 0.0
        %v1206 = vmax.f32 %v1142, 0.0
        %v1207 = vmax.f32 %v1143, 0.0
        %v1208 = vmax.f32 %v1144, 0.0
        %v1209 = vmax.f32 %v1145, 0.0
        %v1210 = vmax.f32 %v1146, 0.0
        %v1211 = vmax.f32 %v1147, 0.0
        %v1212 = vmax.f32 %v1148, 0.0
        %v1213 = vmax.f32 %v1149, 0.0
        %v1214 = vmax.f32 %v1150, 0.0
        %v1215 = vmax.f32 %v1151, 0.0
        %v1216 = vmax.f32 %v1152, 0.0
        %v1217 = vmax.f32 %v1153, 0.0
        %v1218 = vmax.f32 %v1154, 0.0
        %v1219 = vmax.f32 %v1155, 0.0
        %v1220 = vmax.f32 %v1156, 0.0
        %v1221 = vmax.f32 %v1157, 0.0
        %v1222 = vmax.f32 %v1158, 0.0
        %v1223 = vmax.f32 %v1159, 0.0
        %v1224 = vmax.f32 %v1160, 0.0
        %v1225 = vmax.f32 %v1161, 0.0
        %v1226 = vmax.f32 %v1162, 0.0
        %v1227 = vmax.f32 %v1163, 0.0
        %v1228 = vmax.f32 %v1164, 0.0
        %v1229 = vmax.f32 %v1165, 0.0
        %v1230 = vmax.f32 %v1166, 0.0
        %v1231 = vmax.f32 %v1167, 0.0
        %v1232 = vmax.f32 %v1168, 0.0
        %v1233 = vmax.f32 %v1169, 0.0
        %v1234 = vmax.f32 %v1170, 0.0
        %v1235 = vmax.f32 %v1171, 0.0
        %v1236 = vmax.f32 %v1172, 0.0
        %v1237 = vmax.f32 %v1173, 0.0
        %v1238 = vmax.f32 %v1174, 0.0
        %v1239 = vmax.f32 %v1175, 0.0
        %v1240 = vmax.f32 %v1176, 0.0
        %v1241 = vmax.f32 %v1177, 0.0
        %v1242 = vmax.f32 %v1178, 0.0
        %v1243 = vmax.f32 %v1179, 0.0
        %v1244 = vmax.f32 %v1180, 0.0
        %v1245 = vmax.f32 %v1181, 0.0
        %v1246 = vmax.f32 %v1182, 0.0
        %v1247 = vmax.f32 %v1183, 0.0
        %v1248 = vmax.f32 %v1184, 0.0
        %v1249 = vmax.f32 %v1185, 0.0
        %v1250 = vmax.f32 %v1186, 0.0
        %v1251 = vmax.f32 %v1187, 0.0
        %v1252 = vmax.f32 %v1188, 0.0
        %v1253 = vmax.f32 %v1189, 0.0
        %v1254 = vmax.f32 %v1190, 0.0
        %v1255 = vmax.f32 %v1191, 0.0
        %v1256 = vmax.f32 %v1192, 0.0
        %v1257 = vmax.f32 %v1193, 0.0
        %v1258 = vmax.f32 %v1194, 0.0
        %v1259 = vmax.f32 %v1195, 0.0
        %v1260 = vmax.f32 %v1196, 0.0
        %v1261 = vmax.f32 %v1197, 0.0
        %v1262 = vmax.f32 %v1198, 0.0
        %v1263 = vmax.f32 %v1199, 0.0
        %v1264 = vmax.f32 %v1200, 0.0
        %v1265 = vmax.f32 %v1201, 0.0
        %v1266 = vmax.f32 %v1202, 0.0
        %v1267 = vmax.f32 %v1203, 0.0
        %1268 = vst [vmem:[%s202] sm:$0xff] %v1204
        %1269 = vst [vmem:[%s202 + $0x8] sm:$0xff] %v1205
        %1270 = vst [vmem:[%s202 + $0x10] sm:$0xff] %v1206
        %1271 = vst [vmem:[%s202 + $0x18] sm:$0xff] %v1207
        %1272 = vst [vmem:[%s202 + $0x20] sm:$0xff] %v1208
        %1273 = vst [vmem:[%s202 + $0x28] sm:$0xff] %v1209
        %1274 = vst [vmem:[%s202 + $0x30] sm:$0xff] %v1210
        %1275 = vst [vmem:[%s202 + $0x38] sm:$0xff] %v1211
        %1276 = vst [vmem:[%s202 + $0x40] sm:$0xff] %v1212
        %1277 = vst [vmem:[%s202 + $0x48] sm:$0xff] %v1213
        %1278 = vst [vmem:[%s202 + $0x50] sm:$0xff] %v1214
        %1279 = vst [vmem:[%s202 + $0x58] sm:$0xff] %v1215
        %1280 = vst [vmem:[%s202 + $0x60] sm:$0xff] %v1216
        %1281 = vst [vmem:[%s202 + $0x68] sm:$0xff] %v1217
        %1282 = vst [vmem:[%s202 + $0x70] sm:$0xff] %v1218
        %1283 = vst [vmem:[%s202 + $0x78] sm:$0xff] %v1219
        %1284 = vst [vmem:[%s202 + $0x80] sm:$0xff] %v1220
        %1285 = vst [vmem:[%s202 + $0x88] sm:$0xff] %v1221
        %1286 = vst [vmem:[%s202 + $0x90] sm:$0xff] %v1222
        %1287 = vst [vmem:[%s202 + $0x98] sm:$0xff] %v1223
        %1288 = vst [vmem:[%s202 + $0xa0] sm:$0xff] %v1224
        %1289 = vst [vmem:[%s202 + $0xa8] sm:$0xff] %v1225
        %1290 = vst [vmem:[%s202 + $0xb0] sm:$0xff] %v1226
        %1291 = vst [vmem:[%s202 + $0xb8] sm:$0xff] %v1227
        %1292 = vst [vmem:[%s202 + $0xc0] sm:$0xff] %v1228
        %1293 = vst [vmem:[%s202 + $0xc8] sm:$0xff] %v1229
        %1294 = vst [vmem:[%s202 + $0xd0] sm:$0xff] %v1230
        %1295 = vst [vmem:[%s202 + $0xd8] sm:$0xff] %v1231
        %1296 = vst [vmem:[%s202 + $0xe0] sm:$0xff] %v1232
        %1297 = vst [vmem:[%s202 + $0xe8] sm:$0xff] %v1233
        %1298 = vst [vmem:[%s202 + $0xf0] sm:$0xff] %v1234
        %1299 = vst [vmem:[%s202 + $0xf8] sm:$0xff] %v1235
        %1300 = vst [vmem:[%s202 + $0x100] sm:$0xff] %v1236
        %1301 = vst [vmem:[%s202 + $0x108] sm:$0xff] %v1237
        %1302 = vst [vmem:[%s202 + $0x110] sm:$0xff] %v1238
        %1303 = vst [vmem:[%s202 + $0x118] sm:$0xff] %v1239
        %1304 = vst [vmem:[%s202 + $0x120] sm:$0xff] %v1240
        %1305 = vst [vmem:[%s202 + $0x128] sm:$0xff] %v1241
        %1306 = vst [vmem:[%s202 + $0x130] sm:$0xff] %v1242
        %1307 = vst [vmem:[%s202 + $0x138] sm:$0xff] %v1243
        %1308 = vst [vmem:[%s202 + $0x140] sm:$0xff] %v1244
        %1309 = vst [vmem:[%s202 + $0x148] sm:$0xff] %v1245
        %1310 = vst [vmem:[%s202 + $0x150] sm:$0xff] %v1246
        %1311 = vst [vmem:[%s202 + $0x158] sm:$0xff] %v1247
        %1312 = vst [vmem:[%s202 + $0x160] sm:$0xff] %v1248
        %1313 = vst [vmem:[%s202 + $0x168] sm:$0xff] %v1249
        %1314 = vst [vmem:[%s202 + $0x170] sm:$0xff] %v1250
        %1315 = vst [vmem:[%s202 + $0x178] sm:$0xff] %v1251
        %1316 = vst [vmem:[%s202 + $0x180] sm:$0xff] %v1252
        %1317 = vst [vmem:[%s202 + $0x188] sm:$0xff] %v1253
        %1318 = vst [vmem:[%s202 + $0x190] sm:$0xff] %v1254
        %1319 = vst [vmem:[%s202 + $0x198] sm:$0xff] %v1255
        %1320 = vst [vmem:[%s202 + $0x1a0] sm:$0xff] %v1256
        %1321 = vst [vmem:[%s202 + $0x1a8] sm:$0xff] %v1257
        %1322 = vst [vmem:[%s202 + $0x1b0] sm:$0xff] %v1258
        %1323 = vst [vmem:[%s202 + $0x1b8] sm:$0xff] %v1259
        %1324 = vst [vmem:[%s202 + $0x1c0] sm:$0xff] %v1260
        %1325 = vst [vmem:[%s202 + $0x1c8] sm:$0xff] %v1261
        %1326 = vst [vmem:[%s202 + $0x1d0] sm:$0xff] %v1262
        %1327 = vst [vmem:[%s202 + $0x1d8] sm:$0xff] %v1263
        %1328 = vst [vmem:[%s202 + $0x1e0] sm:$0xff] %v1264
        %1329 = vst [vmem:[%s202 + $0x1e8] sm:$0xff] %v1265
        %1330 = vst [vmem:[%s202 + $0x1f0] sm:$0xff] %v1266
        %1331 = vst [vmem:[%s202 + $0x1f8] sm:$0xff] %v1267
      $region48: #{upsampler_block11.1} parent=31 // pred_fallthru
        _
      %s1332 = smul.u32 %s19, %s18
      %s1333 = smul.u32 64, %s1332
      %p1334 = scmp.lt.s32.totalorder %s1333, 63
      %s1335 = scalar_select %p1334, %s1333, 63
      %s1336 = smul.addr %s1335, 8
      %s1337 = scalar_lea.vmem %s3, %s1336
      // Predicated region
      $region49: #{upsampler_block11.1} parent=31 // pred_check
        %p1338 = pneg %p118
      $region50: #{upsampler_block11.1} parent=31 // pred_check_branch
        %1340 = sbr.rel (%p1338) target = $region52
      $region51: #{upsampler_block11.1} parent=31 // pred_region
        %s1341 = smul.u32 %s19, %s18
        %s1342 = smul.u32 64, %s1341
      $region52: #{upsampler_block11.1} parent=31 // pred_fallthru
        _
    $region32: #{upsampler_block11.1} parent=5 // pred_fallthru
      _
    %p1343 = scmp.le.s32.totalorder 2, %s9
    // Predicated region
    $region53: #{upsampler_block11.1} parent=5 // pred_check
      %p1344 = pneg %p1343
    $region54: #{upsampler_block11.1} parent=5 // pred_check_branch
      %1346 = sbr.rel (%p1344) target = $region56
    $region55: #{upsampler_block11.1} parent=5 // pred_region
      %s1347 = ssub.s32 %s9, 2
      // Predicated region
      $region57: #{upsampler_block11.1} parent=55 // pred_check
        %p1348 = pneg %p124
      $region58: #{upsampler_block11.1} parent=55 // pred_check_branch
        %1350 = sbr.rel (%p1348) target = $region60
      $region59: #{upsampler_block11.1} parent=55 // pred_region
        %s1351 = smul.u32 %s21, %s20
        %s1352 = smul.u32 64, %s1351
        %p1353 = scmp.lt.s32.totalorder %s1352, 63
        %s1354 = scalar_select %p1353, %s1352, 63
        %s1355 = smul.addr %s1354, 8
        %s1356 = scalar_lea.vmem %s3, %s1355
      $region60: #{upsampler_block11.1} parent=55 // pred_fallthru
        _
    $region56: #{upsampler_block11.1} parent=5 // pred_fallthru
      _
  $region6: #{upsampler_block11.1} parent=0 // loop_footer
    %s13 = sadd.s32 1, %s9
  $region7: #{upsampler_block11.1} parent=0 // loop_footer_branch
    %8 = sbr.rel target = $region3
  $region8: #{upsampler_block11.1} parent=0 // loop_exit
    _

</llo_original>
